<compile_context>
chip_gen: v7x
topology: tpu7x:2x2x1
jax: 0.10.0
libtpu: 0.0.40
codegen_flags: <defaults>
</compile_context>

<pallas_src>
import functools

import jax
import jax.numpy as jnp
from jax.experimental import pallas as pl
from jax.experimental.pallas import tpu as pltpu

_LANE = 128
_MIB = 1 << 20


def _round_up(x, m):
    return (x + m - 1) // m * m


def _pad2(x, shape, dtype):
    out = jnp.zeros(shape, dtype)
    return out.at[:x.shape[0], :x.shape[1]].set(x.astype(dtype))


def normalized_adjacency(edge_index, num_nodes):
    """Dense A_hat = D^-1/2 (A + I_remaining) D^-1/2 (PyG gcn_norm semantics).

    Duplicate edges sum (message passing sums over edges) and self-loops are
    only added for nodes that do not already have one (add_remaining_self_loops).
    """
    src = edge_index[0]
    dst = edge_index[1]
    a = jnp.zeros((num_nodes, num_nodes), jnp.float32).at[dst, src].add(1.0)
    needs_loop = (jnp.diagonal(a) == 0.0).astype(jnp.float32)
    a = a + jnp.diag(needs_loop)
    deg = jnp.sum(a, axis=1)
    dinv = jnp.where(deg > 0.0, jax.lax.rsqrt(deg), 0.0)
    return dinv[:, None] * a * dinv[None, :]


# ---------------------------------------------------------------------------
# Fused path: all three layers in one pallas_call (A_hat / X / weights resident)
# ---------------------------------------------------------------------------

def _fused_gcn_kernel(a_ref, x_ref, w1_ref, b1_ref, w2_ref, b2_ref,
                      w3_ref, b3_ref, o_ref, *, valid_f):
    def layer(h, w_ref, b_ref):
        # transform-before-propagate:  A @ (H @ W) + b  ==  (A @ H) @ W + b
        hw = jnp.dot(h, w_ref[...], preferred_element_type=jnp.float32)
        return jnp.dot(a_ref[...], hw.astype(jnp.bfloat16),
                       preferred_element_type=jnp.float32) + b_ref[...]

    h = layer(x_ref[...], w1_ref, b1_ref)
    h = jnp.maximum(h, 0.0).astype(jnp.bfloat16)
    h = layer(h, w2_ref, b2_ref)
    h = jnp.maximum(h, 0.0).astype(jnp.bfloat16)
    h = layer(h, w3_ref, b3_ref)

    # softmax over the feature axis; padded lanes masked out.
    lane = jax.lax.broadcasted_iota(jnp.int32, h.shape, 1)
    valid = lane < valid_f
    h = jnp.where(valid, h, -jnp.inf)
    m = jnp.max(h, axis=-1, keepdims=True)
    e = jnp.where(valid, jnp.exp(h - m), 0.0)
    s = jnp.sum(e, axis=-1, keepdims=True)
    o_ref[...] = (e * pl.reciprocal(s, approx=True)).astype(o_ref.dtype)


def _gcn_fused(a_p, x_p, weights, biases, *, valid_f):
    n_pad = a_p.shape[0]
    w1, w2, w3 = weights
    b1, b2, b3 = biases
    fout_final = w3.shape[1]

    flops = 0
    for w in (w1, w2, w3):
        fin, fout = w.shape
        flops += 2 * n_pad * fin * fout + 2 * n_pad * n_pad * fout
    bytes_accessed = sum(int(t.size * t.dtype.itemsize)
                         for t in (a_p, x_p, w1, b1, w2, b2, w3, b3))
    bytes_accessed += n_pad * fout_final * 4
    transcendentals = n_pad * fout_final

    vmem_limit = int(2 * (a_p.size * a_p.dtype.itemsize
                          + x_p.size * x_p.dtype.itemsize
                          + n_pad * fout_final * 4)
                     + 16 * _MIB)                      # weights + intermediates

    def full_spec(shape):
        return pl.BlockSpec(shape, lambda i: (0, 0))

    kernel = functools.partial(_fused_gcn_kernel, valid_f=valid_f)
    out_shape = jax.ShapeDtypeStruct((n_pad, fout_final), jnp.float32)

    return pl.pallas_call(
        kernel,
        out_shape=out_shape,
        grid_spec=pltpu.PrefetchScalarGridSpec(
            num_scalar_prefetch=0,
            grid=(1,),
            in_specs=[full_spec(a_p.shape), full_spec(x_p.shape),
                      full_spec(w1.shape), full_spec(b1.shape),
                      full_spec(w2.shape), full_spec(b2.shape),
                      full_spec(w3.shape), full_spec(b3.shape)],
            out_specs=full_spec(out_shape.shape),
        ),
        compiler_params=pltpu.CompilerParams(
            dimension_semantics=("arbitrary",),
            vmem_limit_bytes=vmem_limit),
        cost_estimate=pl.CostEstimate(flops=int(flops),
                                      transcendentals=int(transcendentals),
                                      bytes_accessed=int(bytes_accessed)),
    )(a_p, x_p, w1, b1, w2, b2, w3, b3)


# ---------------------------------------------------------------------------
# Tiled large-graph path: per layer  XW = X @ W  then  act(A_hat @ XW + b)
# ---------------------------------------------------------------------------

def _xw_kernel(x_ref, w_ref, o_ref, acc_ref):
    k = pl.program_id(1)

    @pl.when(k == 0)
    def _():
        acc_ref[...] = jnp.zeros_like(acc_ref)

    acc_ref[...] += jnp.dot(x_ref[...], w_ref[...],
                            preferred_element_type=jnp.float32)

    @pl.when(k == pl.num_programs(1) - 1)
    def _():
        o_ref[...] = acc_ref[...].astype(o_ref.dtype)


def _xw_matmul(x, w, *, tm, tk):
    n_pad, fin = x.shape
    fout = w.shape[1]
    grid = (n_pad // tm, fin // tk)
    vmem_limit = int(2 * (tm * tk * 2 + tk * fout * 2 + tm * fout * 2)
                     + tm * fout * 4 + 8 * _MIB)
    return pl.pallas_call(
        _xw_kernel,
        out_shape=jax.ShapeDtypeStruct((n_pad, fout), jnp.bfloat16),
        grid_spec=pltpu.PrefetchScalarGridSpec(
            num_scalar_prefetch=0,
            grid=grid,
            in_specs=[pl.BlockSpec((tm, tk), lambda i, k: (i, k)),
                      pl.BlockSpec((tk, fout), lambda i, k: (k, 0))],
            out_specs=pl.BlockSpec((tm, fout), lambda i, k: (i, 0)),
            scratch_shapes=[pltpu.VMEM((tm, fout), jnp.float32)],
        ),
        compiler_params=pltpu.CompilerParams(
            dimension_semantics=("parallel", "arbitrary"),
            vmem_limit_bytes=vmem_limit),
        cost_estimate=pl.CostEstimate(
            flops=int(2 * n_pad * fin * fout), transcendentals=0,
            bytes_accessed=int(x.size * 2 + w.size * 2 + n_pad * fout * 2)),
    )(x, w)


def _prop_kernel(a_ref, xw_ref, b_ref, o_ref, acc_ref, *,
                 activation, valid_f, tk, xw_resident):
    k = pl.program_id(1)

    @pl.when(k == 0)
    def _():
        acc_ref[...] = jnp.zeros_like(acc_ref)

    if xw_resident:
        start = pl.multiple_of(k * tk, tk)
        xw = xw_ref[pl.ds(start, tk), :]
    else:
        xw = xw_ref[...]
    acc_ref[...] += jnp.dot(a_ref[...], xw, preferred_element_type=jnp.float32)

    @pl.when(k == pl.num_programs(1) - 1)
    def _():
        h = acc_ref[...] + b_ref[...]
        if activation == "relu":
            h = jnp.maximum(h, 0.0)
        elif activation == "softmax":
            lane = jax.lax.broadcasted_iota(jnp.int32, h.shape, 1)
            valid = lane < valid_f
            h = jnp.where(valid, h, -jnp.inf)
            m = jnp.max(h, axis=-1, keepdims=True)
            e = jnp.where(valid, jnp.exp(h - m), 0.0)
            s = jnp.sum(e, axis=-1, keepdims=True)
            h = e * pl.reciprocal(s, approx=True)       # EUP slot, not VPU divide
        o_ref[...] = h.astype(o_ref.dtype)


_XW_RESIDENT_MAX_BYTES = 4 * _MIB


def _prop_layer(a_p, xw, b, *, activation, valid_f, tm, tk, out_dtype):
    n_pad = a_p.shape[0]
    fout = xw.shape[1]
    grid = (n_pad // tm, n_pad // tk)
    xw_bytes_total = int(xw.size * xw.dtype.itemsize)
    xw_resident = xw_bytes_total <= _XW_RESIDENT_MAX_BYTES

    if xw_resident:
        xw_spec = pl.BlockSpec((n_pad, fout), lambda i, k: (0, 0))
        xw_hbm_bytes = xw_bytes_total                         # read once
        xw_vmem_bytes = 2 * xw_bytes_total
    else:
        xw_spec = pl.BlockSpec((tk, fout), lambda i, k: (k, 0))
        xw_hbm_bytes = (n_pad // tm) * xw_bytes_total         # re-read per row tile
        xw_vmem_bytes = 2 * tk * fout * xw.dtype.itemsize

    kernel = functools.partial(_prop_kernel, activation=activation,
                               valid_f=valid_f, tk=tk, xw_resident=xw_resident)

    out_itemsize = jnp.dtype(out_dtype).itemsize
    vmem_limit = int(2 * tm * tk * 2                   # A tile, double-buffered
                     + xw_vmem_bytes
                     + tm * fout * 4                   # f32 acc scratch
                     + 2 * tm * fout * out_itemsize
                     + 8 * _MIB)
    bytes_accessed = int(a_p.size * a_p.dtype.itemsize + xw_hbm_bytes
                         + b.size * b.dtype.itemsize + n_pad * fout * out_itemsize)

    return pl.pallas_call(
        kernel,
        out_shape=jax.ShapeDtypeStruct((n_pad, fout), out_dtype),
        grid_spec=pltpu.PrefetchScalarGridSpec(
            num_scalar_prefetch=0,
            grid=grid,
            in_specs=[pl.BlockSpec((tm, tk), lambda i, k: (i, k)),   # A_hat tile
                      xw_spec,                                       # XW (resident/tiled)
                      pl.BlockSpec((1, fout), lambda i, k: (0, 0))], # bias
            out_specs=pl.BlockSpec((tm, fout), lambda i, k: (i, 0)),
            scratch_shapes=[pltpu.VMEM((tm, fout), jnp.float32)],
        ),
        compiler_params=pltpu.CompilerParams(
            dimension_semantics=("parallel", "arbitrary"),
            vmem_limit_bytes=vmem_limit),
        cost_estimate=pl.CostEstimate(
            flops=int(2 * n_pad * n_pad * fout),
            transcendentals=int(n_pad * fout) if activation == "softmax" else 0,
            bytes_accessed=bytes_accessed),
    )(a_p, xw, b)


def _large_tiling(n):
    """(n_pad, tm, tk) for the tiled path; >=2 row tiles whenever possible."""
    n_pad = _round_up(n, 512)
    tm = 1024 if (n_pad % 1024 == 0 and n_pad // 1024 >= 2) else 512
    if n_pad % 2048 == 0:
        tk = 2048
    elif n_pad % 1024 == 0:
        tk = 1024
    else:
        tk = 512
    return n_pad, tm, tk


def _feat_tile(fin):
    for t in (512, 256, 128):
        if fin % t == 0:
            return t
    return fin


# ---------------------------------------------------------------------------
# Forward
# ---------------------------------------------------------------------------

def gcn_forward(x, edge_index, params, *, fused_max_nodes=2048):
    """conv1.relu -> conv2.relu -> conv3 -> softmax(dim=1)."""
    w1, b1, w2, b2, w3, b3 = params
    n, f = x.shape
    h1 = w1.shape[1]
    h2 = w2.shape[1]

    fp = _round_up(f, _LANE)
    h1p = _round_up(h1, _LANE)
    h2p = _round_up(h2, _LANE)

    a_hat = normalized_adjacency(edge_index, n)

    if n <= fused_max_nodes:
        n_pad = _round_up(n, _LANE)
        a_p = _pad2(a_hat, (n_pad, n_pad), jnp.bfloat16)
        x_p = _pad2(x, (n_pad, fp), jnp.bfloat16)
        weights = (_pad2(w1, (fp, h1p), jnp.bfloat16),
                   _pad2(w2, (h1p, h2p), jnp.bfloat16),
                   _pad2(w3, (h2p, fp), jnp.bfloat16))
        biases = (_pad2(b1, (1, h1p), jnp.float32),
                  _pad2(b2, (1, h2p), jnp.float32),
                  _pad2(b3, (1, fp), jnp.float32))
        out = _gcn_fused(a_p, x_p, weights, biases, valid_f=f)
        return out[:n, :f]

    # Tiled large-graph path.
    n_pad, tm, tk = _large_tiling(n)
    a_p = _pad2(a_hat, (n_pad, n_pad), jnp.bfloat16)
    h = _pad2(x, (n_pad, fp), jnp.bfloat16)

    layer_cfg = [
        (_pad2(w1, (fp, h1p), jnp.bfloat16), _pad2(b1, (1, h1p), jnp.float32),
         "relu", h1, jnp.bfloat16),
        (_pad2(w2, (h1p, h2p), jnp.bfloat16), _pad2(b2, (1, h2p), jnp.float32),
         "relu", h2, jnp.bfloat16),
        (_pad2(w3, (h2p, fp), jnp.bfloat16), _pad2(b3, (1, fp), jnp.float32),
         "softmax", f, jnp.float32),
    ]
    for w_p, b_p, act, valid, out_dtype in layer_cfg:
        xw = _xw_matmul(h, w_p, tm=min(512, n_pad), tk=_feat_tile(h.shape[1]))
        h = _prop_layer(a_p, xw, b_p, activation=act, valid_f=valid,
                        tm=tm, tk=tk, out_dtype=out_dtype)
    # TODO(synk): tile-level sparsity skipping (scalar-prefetched nonzero-tile
    # map) would turn the dense A_hat propagation ~O(E); not needed for the
    # dense toy graphs exercised here.
    return h[:n, :f]


def gcn_forward_ref(x, edge_index, params):
    """Pure-JAX f32 reference of the PyTorch forward (for validation)."""
    w1, b1, w2, b2, w3, b3 = params
    a = normalized_adjacency(edge_index, x.shape[0])
    h = jnp.maximum(a @ x @ w1 + b1, 0.0)
    h = jnp.maximum(a @ h @ w2 + b2, 0.0)
    h = a @ h @ w3 + b3
    return jax.nn.softmax(h, axis=1)


# ---------------------------------------------------------------------------
# Example setup
# ---------------------------------------------------------------------------

def init_params(key, num_feats, hid1, hid2):
    """Deterministic glorot-ish weights, zero biases."""
    k1, k2, k3 = jax.random.split(key, 3)

    def glorot(k, fan_in, fan_out):
        lim = jnp.sqrt(6.0 / (fan_in + fan_out))
        return jax.random.uniform(k, (fan_in, fan_out), jnp.float32, -lim, lim)

    return (glorot(k1, num_feats, hid1), jnp.zeros((1, hid1), jnp.float32),
            glorot(k2, hid1, hid2), jnp.zeros((1, hid2), jnp.float32),
            glorot(k3, hid2, num_feats), jnp.zeros((1, num_feats), jnp.float32))


def build_graph(key, num_nodes):
    """Small deterministic undirected graph: ring + a few random chords."""
    ring_src = jnp.arange(num_nodes, dtype=jnp.int32)
    ring_dst = (ring_src + 1) % num_nodes
    src = jnp.concatenate([ring_src, ring_dst])
    dst = jnp.concatenate([ring_dst, ring_src])

    ka, kb = jax.random.split(key)
    extra_a = jax.random.randint(ka, (4,), 0, num_nodes, dtype=jnp.int32)
    extra_b = jax.random.randint(kb, (4,), 0, num_nodes, dtype=jnp.int32)
    src = jnp.concatenate([src, extra_a, extra_b])
    dst = jnp.concatenate([dst, extra_b, extra_a])
    return jnp.stack([src, dst], axis=0)   # edge_index: [2, E]


# TODO(synk): GCN.optimize (Adam training loop, normalize/thresholding,
# matplotlib diagnostics) is host-side training logic, not part of the
# forward hot path — not implemented as a kernel.

if __name__ == "__main__":
    N = 16           # num nodes
    F = 4            # graph.num_feats
    H1, H2 = 10, 10  # hid1_in, hid2_in defaults

    key = jax.random.PRNGKey(0)
    k_x, k_g, k_p = jax.random.split(key, 3)

    x = jax.random.uniform(k_x, (N, F), jnp.float32)   # node features
    edge_index = build_graph(k_g, N)                   # [2, E] int32
    params = init_params(k_p, F, H1, H2)

    ref = jax.block_until_ready(gcn_forward_ref(x, edge_index, params))

    # Fused (single pallas_call) path.
    out = jax.block_until_ready(gcn_forward(x, edge_index, params))
    assert out.shape == (N, F)
    assert bool(jnp.all(out >= 0.0))
    assert bool(jnp.allclose(jnp.sum(out, axis=1), 1.0, atol=1e-2))
    assert bool(jnp.allclose(out, ref, atol=3e-2))

    # Also exercise the tiled large-graph path (forced) for coverage.
    out_tiled = jax.block_until_ready(
        gcn_forward(x, edge_index, params, fused_max_nodes=0))
    assert out_tiled.shape == (N, F)
    assert bool(jnp.allclose(out_tiled, ref, atol=3e-2))

    print("KERNEL_OK")
</pallas_src>

<mosaic_0001>
module attributes {stable_mosaic.version = 11 : i64} {
  func.func @_fused_gcn_kernel(%arg0: i32, %arg1: memref<128x128xbf16, #tpu.memory_space<vmem>>, %arg2: memref<128x128xbf16, #tpu.memory_space<vmem>>, %arg3: memref<128x128xbf16, #tpu.memory_space<vmem>>, %arg4: memref<1x128xf32, #tpu.memory_space<vmem>>, %arg5: memref<128x128xbf16, #tpu.memory_space<vmem>>, %arg6: memref<1x128xf32, #tpu.memory_space<vmem>>, %arg7: memref<128x128xbf16, #tpu.memory_space<vmem>>, %arg8: memref<1x128xf32, #tpu.memory_space<vmem>>, %arg9: memref<128x128xf32, #tpu.memory_space<vmem>>) attributes {dimension_semantics = [#tpu.dimension_semantics<arbitrary>], iteration_bounds = array<i64: 1>, scalar_prefetch = 0 : i64, scratch_operands = 0 : i64, tpu.core_type = #tpu.core_type<tc>, window_params = [{pipeline_mode = #tpu.pipeline_mode<synchronous>, transform_indices = @transform_0, window_bounds = array<i64: 128, 128>}, {pipeline_mode = #tpu.pipeline_mode<synchronous>, transform_indices = @transform_1, window_bounds = array<i64: 128, 128>}, {pipeline_mode = #tpu.pipeline_mode<synchronous>, transform_indices = @transform_2, window_bounds = array<i64: 128, 128>}, {pipeline_mode = #tpu.pipeline_mode<synchronous>, transform_indices = @transform_3, window_bounds = array<i64: 1, 128>}, {pipeline_mode = #tpu.pipeline_mode<synchronous>, transform_indices = @transform_4, window_bounds = array<i64: 128, 128>}, {pipeline_mode = #tpu.pipeline_mode<synchronous>, transform_indices = @transform_5, window_bounds = array<i64: 1, 128>}, {pipeline_mode = #tpu.pipeline_mode<synchronous>, transform_indices = @transform_6, window_bounds = array<i64: 128, 128>}, {pipeline_mode = #tpu.pipeline_mode<synchronous>, transform_indices = @transform_7, window_bounds = array<i64: 1, 128>}, {pipeline_mode = #tpu.pipeline_mode<synchronous>, transform_indices = @transform_8, window_bounds = array<i64: 128, 128>}]} {
    %c0 = arith.constant 0 : index
    %c0_0 = arith.constant 0 : index
    %0 = vector.load %arg2[%c0, %c0_0] : memref<128x128xbf16, #tpu.memory_space<vmem>>, vector<128x128xbf16>
    %c0_1 = arith.constant 0 : index
    %c0_2 = arith.constant 0 : index
    %1 = vector.load %arg3[%c0_1, %c0_2] : memref<128x128xbf16, #tpu.memory_space<vmem>>, vector<128x128xbf16>
    %cst = arith.constant dense<0.000000e+00> : vector<128x128xf32>
    %2 = tpu.matmul %0, %1, %cst {dimension_numbers = #tpu.dot_dimension_numbers<[1], [0], [0], [1], [0, 0, 1, 1], [], []>} : vector<128x128xbf16>, vector<128x128xbf16>, vector<128x128xf32> -> vector<128x128xf32>
    %c0_3 = arith.constant 0 : index
    %c0_4 = arith.constant 0 : index
    %3 = vector.load %arg1[%c0_3, %c0_4] : memref<128x128xbf16, #tpu.memory_space<vmem>>, vector<128x128xbf16>
    %4 = arith.truncf %2 : vector<128x128xf32> to vector<128x128xbf16>
    %cst_5 = arith.constant dense<0.000000e+00> : vector<128x128xf32>
    %5 = tpu.matmul %3, %4, %cst_5 {dimension_numbers = #tpu.dot_dimension_numbers<[1], [0], [0], [1], [0, 0, 1, 1], [], []>} : vector<128x128xbf16>, vector<128x128xbf16>, vector<128x128xf32> -> vector<128x128xf32>
    %c0_6 = arith.constant 0 : index
    %c0_7 = arith.constant 0 : index
    %6 = vector.load %arg4[%c0_6, %c0_7] : memref<1x128xf32, #tpu.memory_space<vmem>>, vector<1x128xf32>
    %7 = vector.broadcast %6 : vector<1x128xf32> to vector<128x128xf32>
    %8 = arith.addf %5, %7 : vector<128x128xf32>
    %cst_8 = arith.constant 0.000000e+00 : f32
    %9 = vector.broadcast %cst_8 : f32 to vector<128x128xf32>
    %10 = arith.maximumf %8, %9 : vector<128x128xf32>
    %11 = arith.truncf %10 : vector<128x128xf32> to vector<128x128xbf16>
    %c0_9 = arith.constant 0 : index
    %c0_10 = arith.constant 0 : index
    %12 = vector.load %arg5[%c0_9, %c0_10] : memref<128x128xbf16, #tpu.memory_space<vmem>>, vector<128x128xbf16>
    %cst_11 = arith.constant dense<0.000000e+00> : vector<128x128xf32>
    %13 = tpu.matmul %11, %12, %cst_11 {dimension_numbers = #tpu.dot_dimension_numbers<[1], [0], [0], [1], [0, 0, 1, 1], [], []>} : vector<128x128xbf16>, vector<128x128xbf16>, vector<128x128xf32> -> vector<128x128xf32>
    %c0_12 = arith.constant 0 : index
    %c0_13 = arith.constant 0 : index
    %14 = vector.load %arg1[%c0_12, %c0_13] : memref<128x128xbf16, #tpu.memory_space<vmem>>, vector<128x128xbf16>
    %15 = arith.truncf %13 : vector<128x128xf32> to vector<128x128xbf16>
    %cst_14 = arith.constant dense<0.000000e+00> : vector<128x128xf32>
    %16 = tpu.matmul %14, %15, %cst_14 {dimension_numbers = #tpu.dot_dimension_numbers<[1], [0], [0], [1], [0, 0, 1, 1], [], []>} : vector<128x128xbf16>, vector<128x128xbf16>, vector<128x128xf32> -> vector<128x128xf32>
    %c0_15 = arith.constant 0 : index
    %c0_16 = arith.constant 0 : index
    %17 = vector.load %arg6[%c0_15, %c0_16] : memref<1x128xf32, #tpu.memory_space<vmem>>, vector<1x128xf32>
    %18 = vector.broadcast %17 : vector<1x128xf32> to vector<128x128xf32>
    %19 = arith.addf %16, %18 : vector<128x128xf32>
    %cst_17 = arith.constant 0.000000e+00 : f32
    %20 = vector.broadcast %cst_17 : f32 to vector<128x128xf32>
    %21 = arith.maximumf %19, %20 : vector<128x128xf32>
    %22 = arith.truncf %21 : vector<128x128xf32> to vector<128x128xbf16>
    %c0_18 = arith.constant 0 : index
    %c0_19 = arith.constant 0 : index
    %23 = vector.load %arg7[%c0_18, %c0_19] : memref<128x128xbf16, #tpu.memory_space<vmem>>, vector<128x128xbf16>
    %cst_20 = arith.constant dense<0.000000e+00> : vector<128x128xf32>
    %24 = tpu.matmul %22, %23, %cst_20 {dimension_numbers = #tpu.dot_dimension_numbers<[1], [0], [0], [1], [0, 0, 1, 1], [], []>} : vector<128x128xbf16>, vector<128x128xbf16>, vector<128x128xf32> -> vector<128x128xf32>
    %c0_21 = arith.constant 0 : index
    %c0_22 = arith.constant 0 : index
    %25 = vector.load %arg1[%c0_21, %c0_22] : memref<128x128xbf16, #tpu.memory_space<vmem>>, vector<128x128xbf16>
    %26 = arith.truncf %24 : vector<128x128xf32> to vector<128x128xbf16>
    %cst_23 = arith.constant dense<0.000000e+00> : vector<128x128xf32>
    %27 = tpu.matmul %25, %26, %cst_23 {dimension_numbers = #tpu.dot_dimension_numbers<[1], [0], [0], [1], [0, 0, 1, 1], [], []>} : vector<128x128xbf16>, vector<128x128xbf16>, vector<128x128xf32> -> vector<128x128xf32>
    %c0_24 = arith.constant 0 : index
    %c0_25 = arith.constant 0 : index
    %28 = vector.load %arg8[%c0_24, %c0_25] : memref<1x128xf32, #tpu.memory_space<vmem>>, vector<1x128xf32>
    %29 = vector.broadcast %28 : vector<1x128xf32> to vector<128x128xf32>
    %30 = arith.addf %27, %29 : vector<128x128xf32>
    %31 = tpu.iota {dimensions = array<i32: 1>} : vector<128x128xi32>
    %c4_i32 = arith.constant 4 : i32
    %32 = vector.broadcast %c4_i32 : i32 to vector<128x128xi32>
    %33 = arith.cmpi slt, %31, %32 : vector<128x128xi32>
    %cst_26 = arith.constant 0xFF800000 : f32
    %34 = vector.broadcast %cst_26 : f32 to vector<128x128xf32>
    %35 = arith.select %33, %30, %34 : vector<128x128xi1>, vector<128x128xf32>
    %cst_27 = arith.constant dense<0xFF800000> : vector<128xf32>
    %36 = vector.multi_reduction <maximumf>, %35, %cst_27 [1] : vector<128x128xf32> to vector<128xf32>
    %37 = vector.shape_cast %36 : vector<128xf32> to vector<128x1xf32>
    %38 = vector.broadcast %37 : vector<128x1xf32> to vector<128x128xf32>
    %39 = arith.subf %35, %38 : vector<128x128xf32>
    %40 = math.exp %39 : vector<128x128xf32>
    %cst_28 = arith.constant 0.000000e+00 : f32
    %41 = vector.broadcast %cst_28 : f32 to vector<128x128xf32>
    %42 = arith.select %33, %40, %41 : vector<128x128xi1>, vector<128x128xf32>
    %cst_29 = arith.constant dense<0.000000e+00> : vector<128xf32>
    %43 = vector.multi_reduction <add>, %42, %cst_29 [1] : vector<128x128xf32> to vector<128xf32>
    %44 = vector.shape_cast %43 : vector<128xf32> to vector<128x1xf32>
    %45 = tpu.reciprocal %44 {approx = true} : vector<128x1xf32> -> vector<128x1xf32>
    %46 = vector.broadcast %45 : vector<128x1xf32> to vector<128x128xf32>
    %47 = arith.mulf %42, %46 : vector<128x128xf32>
    %c0_30 = arith.constant 0 : index
    %c0_31 = arith.constant 0 : index
    %48 = vector.load %arg9[%c0_30, %c0_31] : memref<128x128xf32, #tpu.memory_space<vmem>>, vector<128x128xf32>
    tpu.vector_store %arg9[%c0_30, %c0_31], %47 {strides = array<i32>} : memref<128x128xf32, #tpu.memory_space<vmem>>, vector<128x128xf32>,
    return
  }
  func.func @transform_0(%arg0: i32) -> (i32, i32) {
    %c0_i32 = arith.constant 0 : i32
    %c0_i32_0 = arith.constant 0 : i32
    %c0_i32_1 = arith.constant 0 : i32
    return %c0_i32, %c0_i32_0 : i32, i32
  }
  func.func @transform_1(%arg0: i32) -> (i32, i32) {
    %c0_i32 = arith.constant 0 : i32
    %c0_i32_0 = arith.constant 0 : i32
    %c0_i32_1 = arith.constant 0 : i32
    return %c0_i32, %c0_i32_0 : i32, i32
  }
  func.func @transform_2(%arg0: i32) -> (i32, i32) {
    %c0_i32 = arith.constant 0 : i32
    %c0_i32_0 = arith.constant 0 : i32
    %c0_i32_1 = arith.constant 0 : i32
    return %c0_i32, %c0_i32_0 : i32, i32
  }
  func.func @transform_3(%arg0: i32) -> (i32, i32) {
    %c0_i32 = arith.constant 0 : i32
    %c0_i32_0 = arith.constant 0 : i32
    %c0_i32_1 = arith.constant 0 : i32
    return %c0_i32, %c0_i32_0 : i32, i32
  }
  func.func @transform_4(%arg0: i32) -> (i32, i32) {
    %c0_i32 = arith.constant 0 : i32
    %c0_i32_0 = arith.constant 0 : i32
    %c0_i32_1 = arith.constant 0 : i32
    return %c0_i32, %c0_i32_0 : i32, i32
  }
  func.func @transform_5(%arg0: i32) -> (i32, i32) {
    %c0_i32 = arith.constant 0 : i32
    %c0_i32_0 = arith.constant 0 : i32
    %c0_i32_1 = arith.constant 0 : i32
    return %c0_i32, %c0_i32_0 : i32, i32
  }
  func.func @transform_6(%arg0: i32) -> (i32, i32) {
    %c0_i32 = arith.constant 0 : i32
    %c0_i32_0 = arith.constant 0 : i32
    %c0_i32_1 = arith.constant 0 : i32
    return %c0_i32, %c0_i32_0 : i32, i32
  }
  func.func @transform_7(%arg0: i32) -> (i32, i32) {
    %c0_i32 = arith.constant 0 : i32
    %c0_i32_0 = arith.constant 0 : i32
    %c0_i32_1 = arith.constant 0 : i32
    return %c0_i32, %c0_i32_0 : i32, i32
  }
  func.func @transform_8(%arg0: i32) -> (i32, i32) {
    %c0_i32 = arith.constant 0 : i32
    %c0_i32_0 = arith.constant 0 : i32
    %c0_i32_1 = arith.constant 0 : i32
    return %c0_i32, %c0_i32_0 : i32, i32
  }
}

</mosaic_0001>

<llo_original>
// kernel: tpu_custom_call.1
$region0: #{tpu_custom_call.1}
  #allocation0 [shape = 'u32[]', space=smem, size = 0x4, offset = 0x4, fixed_abs, tag = 'smem constant byte address 0x4 - core index']
  #allocation1 [shape = 'u32[144,128]{1,0:T(1,128)}', space=vmem, size = 0x12000, scoped, tag = 'internal scratch']
  %s0 = inlined_call_operand.hbm [shape: bf16[128,128], index: 0, kind: input, shape index: {}]
  %s1 = inlined_call_operand.hbm [shape: bf16[128,128], index: 1, kind: input, shape index: {}]
  %s2 = inlined_call_operand.hbm [shape: bf16[128,128], index: 2, kind: input, shape index: {}]
  %s3 = inlined_call_operand.vmem [shape: f32[1,128], index: 3, kind: input, shape index: {}]
  %s4 = inlined_call_operand.hbm [shape: bf16[128,128], index: 4, kind: input, shape index: {}]
  %s5 = inlined_call_operand.vmem [shape: f32[1,128], index: 5, kind: input, shape index: {}]
  %s6 = inlined_call_operand.hbm [shape: bf16[128,128], index: 6, kind: input, shape index: {}]
  %s7 = inlined_call_operand.vmem [shape: f32[1,128], index: 7, kind: input, shape index: {}]
  %s8 = inlined_call_operand.hbm [shape: f32[128,128], index: 8, kind: output, shape index: {}]
  %s9 = sld [smem:[#allocation0]]
  $region62: #{tpu_custom_call.1} parent=0
    _
  %s11 = ssub.s32 1, %s9
  %s12 = scalar_select 0, %s11, %s9
  $region1: #{tpu_custom_call.1} parent=0
    #allocation2 [shape = 'u8[32768]{0}', space=vmem, size = 0x8000, scoped, tag = 'input window, operand 0, single buffered']
    #allocation3 [shape = 's32[1]{0}', space=sflag, size = 0x4, scoped, tag = 'scoped memory for tpu_custom_call.1']
    #allocation4 [shape = 's32[1]{0}', space=sflag, size = 0x4, scoped, tag = 'scoped memory for tpu_custom_call.1']
    #allocation5 [shape = 'u8[32768]{0}', space=vmem, size = 0x8000, scoped, tag = 'input window, operand 1, single buffered']
    #allocation6 [shape = 's32[1]{0}', space=sflag, size = 0x4, scoped, tag = 'scoped memory for tpu_custom_call.1']
    #allocation7 [shape = 'u8[32768]{0}', space=vmem, size = 0x8000, scoped, tag = 'input window, operand 2, single buffered']
    #allocation8 [shape = 'u8[32768]{0}', space=vmem, size = 0x8000, scoped, tag = 'input window, operand 4, single buffered']
    #allocation9 [shape = 's32[1]{0}', space=sflag, size = 0x4, scoped, tag = 'scoped memory for tpu_custom_call.1']
    #allocation10 [shape = 'u8[32768]{0}', space=vmem, size = 0x8000, scoped, tag = 'input window, operand 6, single buffered']
    #allocation11 [shape = 'u8[65536]{0}', space=vmem, size = 0x10000, scoped, tag = 'output window, operand 0, single buffered']
    %13 = vsyncpa [#allocation3], 0
    %14 = vsyncpa [#allocation6], 0
    %15 = vsyncpa [#allocation9], 0
    %16 = vsyncpa [#allocation4], 0
    // Predicated region
    $region2: #{tpu_custom_call.1} parent=1 // pred_check
      _
    $region3: #{tpu_custom_call.1} parent=1 // pred_check_branch
      %18 = sbr.rel (0) target = $region5
    $region4: #{tpu_custom_call.1} parent=1 // pred_region
      %s20 = ssub.s32 1024, 1024
      %21 = vsyncadd [#allocation3], %s20
      %s22 = sshll.u32 [#allocation2], 4
      %s23 = int_to_ptr.vmem [resolvable:$true] %s22
      %28 = dma.hbm_to_vmem [thread:$0]  %s0, 1024, %s23, [#allocation3], 64, 64, 4
    $region5: #{tpu_custom_call.1} parent=1 // pred_fallthru
      _
    // Predicated region
    $region6: #{tpu_custom_call.1} parent=1 // pred_check
      _
    $region7: #{tpu_custom_call.1} parent=1 // pred_check_branch
      %30 = sbr.rel (0) target = $region9
    $region8: #{tpu_custom_call.1} parent=1 // pred_region
      %s32 = ssub.s32 1024, 1024
      %33 = vsyncadd [#allocation6], %s32
      %s34 = sshll.u32 [#allocation5], 4
      %s35 = int_to_ptr.vmem [resolvable:$true] %s34
      %40 = dma.hbm_to_vmem [thread:$0]  %s1, 1024, %s35, [#allocation6], 64, 64, 4
    $region9: #{tpu_custom_call.1} parent=1 // pred_fallthru
      _
    // Predicated region
    $region10: #{tpu_custom_call.1} parent=1 // pred_check
      _
    $region11: #{tpu_custom_call.1} parent=1 // pred_check_branch
      %42 = sbr.rel (0) target = $region13
    $region12: #{tpu_custom_call.1} parent=1 // pred_region
      %s44 = ssub.s32 1024, 1024
      %45 = vsyncadd [#allocation6], %s44
      %s46 = sshll.u32 [#allocation7], 4
      %s47 = int_to_ptr.vmem [resolvable:$true] %s46
      %52 = dma.hbm_to_vmem [thread:$0]  %s2, 1024, %s47, [#allocation6], 64, 64, 4
    $region13: #{tpu_custom_call.1} parent=1 // pred_fallthru
      _
    // Predicated region
    $region14: #{tpu_custom_call.1} parent=1 // pred_check
      _
    $region15: #{tpu_custom_call.1} parent=1 // pred_check_branch
      %54 = sbr.rel (0) target = $region17
    $region16: #{tpu_custom_call.1} parent=1 // pred_region
      _
    $region17: #{tpu_custom_call.1} parent=1 // pred_fallthru
      _
    // Predicated region
    $region18: #{tpu_custom_call.1} parent=1 // pred_check
      _
    $region19: #{tpu_custom_call.1} parent=1 // pred_check_branch
      %56 = sbr.rel (0) target = $region21
    $region20: #{tpu_custom_call.1} parent=1 // pred_region
      %s58 = ssub.s32 1024, 1024
      %59 = vsyncadd [#allocation9], %s58
      %s60 = sshll.u32 [#allocation8], 4
      %s61 = int_to_ptr.vmem [resolvable:$true] %s60
      %66 = dma.hbm_to_vmem [thread:$0]  %s4, 1024, %s61, [#allocation9], 64, 64, 4
    $region21: #{tpu_custom_call.1} parent=1 // pred_fallthru
      _
    // Predicated region
    $region22: #{tpu_custom_call.1} parent=1 // pred_check
      _
    $region23: #{tpu_custom_call.1} parent=1 // pred_check_branch
      %68 = sbr.rel (0) target = $region25
    $region24: #{tpu_custom_call.1} parent=1 // pred_region
      _
    $region25: #{tpu_custom_call.1} parent=1 // pred_fallthru
      _
    // Predicated region
    $region26: #{tpu_custom_call.1} parent=1 // pred_check
      _
    $region27: #{tpu_custom_call.1} parent=1 // pred_check_branch
      %70 = sbr.rel (0) target = $region29
    $region28: #{tpu_custom_call.1} parent=1 // pred_region
      %s72 = ssub.s32 1024, 1024
      %73 = vsyncadd [#allocation9], %s72
      %s74 = sshll.u32 [#allocation10], 4
      %s75 = int_to_ptr.vmem [resolvable:$true] %s74
      %80 = dma.hbm_to_vmem [thread:$0]  %s6, 1024, %s75, [#allocation9], 64, 64, 4
    $region29: #{tpu_custom_call.1} parent=1 // pred_fallthru
      _
    // Predicated region
    $region30: #{tpu_custom_call.1} parent=1 // pred_check
      _
    $region31: #{tpu_custom_call.1} parent=1 // pred_check_branch
      %82 = sbr.rel (0) target = $region33
    $region32: #{tpu_custom_call.1} parent=1 // pred_region
      _
    $region33: #{tpu_custom_call.1} parent=1 // pred_fallthru
      _
    // Predicated region
    $region34: #{tpu_custom_call.1} parent=1 // pred_check
      _
    $region35: #{tpu_custom_call.1} parent=1 // pred_check_branch
      %84 = sbr.rel (0) target = $region37
    $region36: #{tpu_custom_call.1} parent=1 // pred_region
      %85 = dma.done [#allocation3], 1024
    $region37: #{tpu_custom_call.1} parent=1 // pred_fallthru
      _
    // Predicated region
    $region38: #{tpu_custom_call.1} parent=1 // pred_check
      _
    $region39: #{tpu_custom_call.1} parent=1 // pred_check_branch
      %87 = sbr.rel (0) target = $region41
    $region40: #{tpu_custom_call.1} parent=1 // pred_region
      %88 = dma.done [#allocation6], 1024
    $region41: #{tpu_custom_call.1} parent=1 // pred_fallthru
      _
    // Predicated region
    $region42: #{tpu_custom_call.1} parent=1 // pred_check
      _
    $region43: #{tpu_custom_call.1} parent=1 // pred_check_branch
      %90 = sbr.rel (0) target = $region45
    $region44: #{tpu_custom_call.1} parent=1 // pred_region
      %91 = dma.done [#allocation6], 1024
    $region45: #{tpu_custom_call.1} parent=1 // pred_fallthru
      _
    // Predicated region
    $region46: #{tpu_custom_call.1} parent=1 // pred_check
      _
    $region47: #{tpu_custom_call.1} parent=1 // pred_check_branch
      %93 = sbr.rel (0) target = $region49
    $region48: #{tpu_custom_call.1} parent=1 // pred_region
      %94 = dma.done [#allocation9], 1024
    $region49: #{tpu_custom_call.1} parent=1 // pred_fallthru
      _
    // Predicated region
    $region50: #{tpu_custom_call.1} parent=1 // pred_check
      _
    $region51: #{tpu_custom_call.1} parent=1 // pred_check_branch
      %96 = sbr.rel (0) target = $region53
    $region52: #{tpu_custom_call.1} parent=1 // pred_region
      %97 = dma.done [#allocation9], 1024
    $region53: #{tpu_custom_call.1} parent=1 // pred_fallthru
      _
    %v99 = vld [vmem:[#allocation5] sm:$0xf]
    %v100 = vld [vmem:[#allocation5 + $0x4] sm:$0xf]
    %v101 = vld [vmem:[#allocation5 + $0x8] sm:$0xf]
    %v102 = vld [vmem:[#allocation5 + $0xc] sm:$0xf]
    %v103 = vld [vmem:[#allocation5 + $0x10] sm:$0xf]
    %v104 = vld [vmem:[#allocation5 + $0x14] sm:$0xf]
    %v105 = vld [vmem:[#allocation5 + $0x18] sm:$0xf]
    %v106 = vld [vmem:[#allocation5 + $0x1c] sm:$0xf]
    %v107 = vld [vmem:[#allocation5 + $0x20] sm:$0xf]
    %v108 = vld [vmem:[#allocation5 + $0x24] sm:$0xf]
    %v109 = vld [vmem:[#allocation5 + $0x28] sm:$0xf]
    %v110 = vld [vmem:[#allocation5 + $0x2c] sm:$0xf]
    %v111 = vld [vmem:[#allocation5 + $0x30] sm:$0xf]
    %v112 = vld [vmem:[#allocation5 + $0x34] sm:$0xf]
    %v113 = vld [vmem:[#allocation5 + $0x38] sm:$0xf]
    %v114 = vld [vmem:[#allocation5 + $0x3c] sm:$0xf]
    %v115 = vld [vmem:[#allocation7] sm:$0xf]
    %v116 = vld [vmem:[#allocation7 + $0x4] sm:$0xf]
    %v117 = vld [vmem:[#allocation7 + $0x8] sm:$0xf]
    %v118 = vld [vmem:[#allocation7 + $0xc] sm:$0xf]
    %v119 = vld [vmem:[#allocation7 + $0x10] sm:$0xf]
    %v120 = vld [vmem:[#allocation7 + $0x14] sm:$0xf]
    %v121 = vld [vmem:[#allocation7 + $0x18] sm:$0xf]
    %v122 = vld [vmem:[#allocation7 + $0x1c] sm:$0xf]
    %v123 = vld [vmem:[#allocation7 + $0x20] sm:$0xf]
    %v124 = vld [vmem:[#allocation7 + $0x24] sm:$0xf]
    %v125 = vld [vmem:[#allocation7 + $0x28] sm:$0xf]
    %v126 = vld [vmem:[#allocation7 + $0x2c] sm:$0xf]
    %v127 = vld [vmem:[#allocation7 + $0x30] sm:$0xf]
    %v128 = vld [vmem:[#allocation7 + $0x34] sm:$0xf]
    %v129 = vld [vmem:[#allocation7 + $0x38] sm:$0xf]
    %v130 = vld [vmem:[#allocation7 + $0x3c] sm:$0xf]
    %v147 = vunpack.c.l.b16 %v99
    %v148 = vunpack.c.l.b16 %v100
    %v149 = vunpack.c.l.b16 %v101
    %v150 = vunpack.c.l.b16 %v102
    %v151 = vunpack.c.l.b16 %v103
    %v152 = vunpack.c.l.b16 %v104
    %v153 = vunpack.c.l.b16 %v105
    %v154 = vunpack.c.l.b16 %v106
    %v155 = vunpack.c.l.b16 %v107
    %v156 = vunpack.c.l.b16 %v108
    %v157 = vunpack.c.l.b16 %v109
    %v158 = vunpack.c.l.b16 %v110
    %v159 = vunpack.c.l.b16 %v111
    %v160 = vunpack.c.l.b16 %v112
    %v161 = vunpack.c.l.b16 %v113
    %v162 = vunpack.c.l.b16 %v114
    %v163 = vpack.c.b16 %v148, %v147
    %v164 = vpack.c.b16 %v150, %v149
    %v165 = vpack.c.b16 %v152, %v151
    %v166 = vpack.c.b16 %v154, %v153
    %v167 = vpack.c.b16 %v156, %v155
    %v168 = vpack.c.b16 %v158, %v157
    %v169 = vpack.c.b16 %v160, %v159
    %v170 = vpack.c.b16 %v162, %v161
    %v195 = vunpack.c.l.b16 %v115
    %v196 = vunpack.c.l.b16 %v116
    %v197 = vunpack.c.l.b16 %v117
    %v198 = vunpack.c.l.b16 %v118
    %v199 = vunpack.c.l.b16 %v119
    %v200 = vunpack.c.l.b16 %v120
    %v201 = vunpack.c.l.b16 %v121
    %v202 = vunpack.c.l.b16 %v122
    %v203 = vunpack.c.l.b16 %v123
    %v204 = vunpack.c.l.b16 %v124
    %v205 = vunpack.c.l.b16 %v125
    %v206 = vunpack.c.l.b16 %v126
    %v207 = vunpack.c.l.b16 %v127
    %v208 = vunpack.c.l.b16 %v128
    %v209 = vunpack.c.l.b16 %v129
    %v210 = vunpack.c.l.b16 %v130
    %v211 = vpack.c.b16 %v196, %v195
    %v212 = vpack.c.b16 %v198, %v197
    %v213 = vpack.c.b16 %v200, %v199
    %v214 = vpack.c.b16 %v202, %v201
    %v215 = vpack.c.b16 %v204, %v203
    %v216 = vpack.c.b16 %v206, %v205
    %v217 = vpack.c.b16 %v208, %v207
    %v218 = vpack.c.b16 %v210, %v209
    %227 = vmatprep.subr.bf16.mxu0 0
    %228 = vmatpush1.bf16.msra.mxu0 %v211
    %229 = vmatprep.subr.bf16.mxu0 0
    %230 = vmatpush1.bf16.msra.mxu0 %v212
    %231 = vmatprep.subr.bf16.mxu0 0
    %232 = vmatpush1.bf16.msra.mxu0 %v213
    %233 = vmatprep.subr.bf16.mxu0 0
    %234 = vmatpush1.bf16.msra.mxu0 %v214
    %235 = vmatprep.subr.bf16.mxu0 0
    %236 = vmatpush1.bf16.msra.mxu0 %v215
    %237 = vmatprep.subr.bf16.mxu0 0
    %238 = vmatpush1.bf16.msra.mxu0 %v216
    %239 = vmatprep.subr.bf16.mxu0 0
    %240 = vmatpush1.bf16.msra.mxu0 %v217
    %241 = vmatprep.subr.bf16.mxu0 0
    %242 = vmatpush1.bf16.msra.mxu0 %v218
    %243 = vmatprep.subr.bf16.mxu0 0
    %244 = vmatpush1.bf16.msra.mxu0 0
    %245 = vmatprep.subr.bf16.mxu0 0
    %246 = vmatpush1.bf16.msra.mxu0 0
    %247 = vmatprep.subr.bf16.mxu0 0
    %248 = vmatpush1.bf16.msra.mxu0 0
    %249 = vmatprep.subr.bf16.mxu0 0
    %250 = vmatpush1.bf16.msra.mxu0 0
    %251 = vmatprep.subr.bf16.mxu0 0
    %252 = vmatpush1.bf16.msra.mxu0 0
    %253 = vmatprep.subr.bf16.mxu0 0
    %254 = vmatpush1.bf16.msra.mxu0 0
    %255 = vmatprep.subr.bf16.mxu0 0
    %256 = vmatpush1.bf16.msra.mxu0 0
    %257 = vmatprep.subr.bf16.mxu0 0
    %258 = vmatpush1.bf16.msra.mxu0 0
    %259 = vmatprep.mubr.bf16.mxu0 0
    %260 = vmatmul.mubr.bf16.gmra.mrb[0].mxu0 %v163
    %v261 = vpop.f32.mrb[0].mxu0
    %v262 = vadd.f32 0.0, %v261
    %v263 = vpop.f32.mrb[0].mxu0
    %v264 = vpop.f32.mrb[0].mxu0
    %v265 = vadd.f32 0.0, %v264
    %v266 = vpop.f32.mrb[0].mxu0
    %267 = vmatprep.mubr.bf16.mxu0 0
    %268 = vmatmul.mubr.bf16.gmra.mrb[0].mxu0 %v164
    %v269 = vpop.f32.mrb[0].mxu0
    %v270 = vadd.f32 0.0, %v269
    %v271 = vpop.f32.mrb[0].mxu0
    %v272 = vpop.f32.mrb[0].mxu0
    %v273 = vadd.f32 0.0, %v272
    %v274 = vpop.f32.mrb[0].mxu0
    %275 = vmatprep.mubr.bf16.mxu0 0
    %276 = vmatmul.mubr.bf16.gmra.mrb[0].mxu0 %v165
    %v277 = vpop.f32.mrb[0].mxu0
    %v278 = vadd.f32 0.0, %v277
    %v279 = vpop.f32.mrb[0].mxu0
    %v280 = vpop.f32.mrb[0].mxu0
    %v281 = vadd.f32 0.0, %v280
    %v282 = vpop.f32.mrb[0].mxu0
    %283 = vmatprep.mubr.bf16.mxu0 0
    %284 = vmatmul.mubr.bf16.gmra.mrb[0].mxu0 %v166
    %v285 = vpop.f32.mrb[0].mxu0
    %v286 = vadd.f32 0.0, %v285
    %v287 = vpop.f32.mrb[0].mxu0
    %v288 = vpop.f32.mrb[0].mxu0
    %v289 = vadd.f32 0.0, %v288
    %v290 = vpop.f32.mrb[0].mxu0
    %291 = vmatprep.mubr.bf16.mxu0 0
    %292 = vmatmul.mubr.bf16.gmra.mrb[0].mxu0 %v167
    %v293 = vpop.f32.mrb[0].mxu0
    %v294 = vadd.f32 0.0, %v293
    %v295 = vpop.f32.mrb[0].mxu0
    %v296 = vpop.f32.mrb[0].mxu0
    %v297 = vadd.f32 0.0, %v296
    %v298 = vpop.f32.mrb[0].mxu0
    %299 = vmatprep.mubr.bf16.mxu0 0
    %300 = vmatmul.mubr.bf16.gmra.mrb[0].mxu0 %v168
    %v301 = vpop.f32.mrb[0].mxu0
    %v302 = vadd.f32 0.0, %v301
    %v303 = vpop.f32.mrb[0].mxu0
    %v304 = vpop.f32.mrb[0].mxu0
    %v305 = vadd.f32 0.0, %v304
    %v306 = vpop.f32.mrb[0].mxu0
    %307 = vmatprep.mubr.bf16.mxu0 0
    %308 = vmatmul.mubr.bf16.gmra.mrb[0].mxu0 %v169
    %v309 = vpop.f32.mrb[0].mxu0
    %v310 = vadd.f32 0.0, %v309
    %v311 = vpop.f32.mrb[0].mxu0
    %v312 = vpop.f32.mrb[0].mxu0
    %v313 = vadd.f32 0.0, %v312
    %v314 = vpop.f32.mrb[0].mxu0
    %315 = vmatprep.mubr.bf16.mxu0 0
    %316 = vmatmul.mubr.bf16.gmra.mrb[0].mxu0 %v170
    %v317 = vpop.f32.mrb[0].mxu0
    %v318 = vadd.f32 0.0, %v317
    %v319 = vpop.f32.mrb[0].mxu0
    %v320 = vpop.f32.mrb[0].mxu0
    %v321 = vadd.f32 0.0, %v320
    %v322 = vpop.f32.mrb[0].mxu0
    %323 = vdwg.mxu0
    %v324 = vld [vmem:[#allocation2] sm:$0xf]
    %v325 = vld [vmem:[#allocation2 + $0x4] sm:$0xf]
    %v326 = vld [vmem:[#allocation2 + $0x8] sm:$0xf]
    %v327 = vld [vmem:[#allocation2 + $0xc] sm:$0xf]
    %v328 = vld [vmem:[#allocation2 + $0x10] sm:$0xf]
    %v329 = vld [vmem:[#allocation2 + $0x14] sm:$0xf]
    %v330 = vld [vmem:[#allocation2 + $0x18] sm:$0xf]
    %v331 = vld [vmem:[#allocation2 + $0x1c] sm:$0xf]
    %v332 = vld [vmem:[#allocation2 + $0x20] sm:$0xf]
    %v333 = vld [vmem:[#allocation2 + $0x24] sm:$0xf]
    %v334 = vld [vmem:[#allocation2 + $0x28] sm:$0xf]
    %v335 = vld [vmem:[#allocation2 + $0x2c] sm:$0xf]
    %v336 = vld [vmem:[#allocation2 + $0x30] sm:$0xf]
    %v337 = vld [vmem:[#allocation2 + $0x34] sm:$0xf]
    %v338 = vld [vmem:[#allocation2 + $0x38] sm:$0xf]
    %v339 = vld [vmem:[#allocation2 + $0x3c] sm:$0xf]
    %v340 = vpack.c.bf16 %v265, %v262
    %v341 = vpack.c.bf16 %v273, %v270
    %v342 = vpack.c.bf16 %v281, %v278
    %v343 = vpack.c.bf16 %v289, %v286
    %v344 = vpack.c.bf16 %v297, %v294
    %v345 = vpack.c.bf16 %v305, %v302
    %v346 = vpack.c.bf16 %v313, %v310
    %v347 = vpack.c.bf16 %v321, %v318
    %v348 = vld [vmem:[%s3] sm:$0x1]
    %v350 = vlaneseq
    %v351 = vshrl.u32 %v350, 7
    %v352 = vsub.s32 0, %v351
    %v353 = vrot.slane %v348, %v352
    %v371 = vunpack.c.l.b16 %v324
    %v372 = vunpack.c.l.b16 %v325
    %v373 = vunpack.c.l.b16 %v326
    %v374 = vunpack.c.l.b16 %v327
    %v375 = vunpack.c.l.b16 %v328
    %v376 = vunpack.c.l.b16 %v329
    %v377 = vunpack.c.l.b16 %v330
    %v378 = vunpack.c.l.b16 %v331
    %v379 = vunpack.c.l.b16 %v332
    %v380 = vunpack.c.l.b16 %v333
    %v381 = vunpack.c.l.b16 %v334
    %v382 = vunpack.c.l.b16 %v335
    %v383 = vunpack.c.l.b16 %v336
    %v384 = vunpack.c.l.b16 %v337
    %v385 = vunpack.c.l.b16 %v338
    %v386 = vunpack.c.l.b16 %v339
    %v387 = vpack.c.b16 %v372, %v371
    %v388 = vpack.c.b16 %v374, %v373
    %v389 = vpack.c.b16 %v376, %v375
    %v390 = vpack.c.b16 %v378, %v377
    %v391 = vpack.c.b16 %v380, %v379
    %v392 = vpack.c.b16 %v382, %v381
    %v393 = vpack.c.b16 %v384, %v383
    %v394 = vpack.c.b16 %v386, %v385
    %403 = vmatprep.subr.bf16.mxu0 0
    %404 = vmatpush1.bf16.msra.mxu0 %v340
    %405 = vmatprep.subr.bf16.mxu0 0
    %406 = vmatpush1.bf16.msra.mxu0 %v341
    %407 = vmatprep.subr.bf16.mxu0 0
    %408 = vmatpush1.bf16.msra.mxu0 %v342
    %409 = vmatprep.subr.bf16.mxu0 0
    %410 = vmatpush1.bf16.msra.mxu0 %v343
    %411 = vmatprep.subr.bf16.mxu0 0
    %412 = vmatpush1.bf16.msra.mxu0 %v344
    %413 = vmatprep.subr.bf16.mxu0 0
    %414 = vmatpush1.bf16.msra.mxu0 %v345
    %415 = vmatprep.subr.bf16.mxu0 0
    %416 = vmatpush1.bf16.msra.mxu0 %v346
    %417 = vmatprep.subr.bf16.mxu0 0
    %418 = vmatpush1.bf16.msra.mxu0 %v347
    %419 = vmatprep.subr.bf16.mxu0 0
    %420 = vmatpush1.bf16.msra.mxu0 0
    %421 = vmatprep.subr.bf16.mxu0 0
    %422 = vmatpush1.bf16.msra.mxu0 0
    %423 = vmatprep.subr.bf16.mxu0 0
    %424 = vmatpush1.bf16.msra.mxu0 0
    %425 = vmatprep.subr.bf16.mxu0 0
    %426 = vmatpush1.bf16.msra.mxu0 0
    %427 = vmatprep.subr.bf16.mxu0 0
    %428 = vmatpush1.bf16.msra.mxu0 0
    %429 = vmatprep.subr.bf16.mxu0 0
    %430 = vmatpush1.bf16.msra.mxu0 0
    %431 = vmatprep.subr.bf16.mxu0 0
    %432 = vmatpush1.bf16.msra.mxu0 0
    %433 = vmatprep.subr.bf16.mxu0 0
    %434 = vmatpush1.bf16.msra.mxu0 0
    %435 = vmatprep.mubr.bf16.mxu0 0
    %436 = vmatmul.mubr.bf16.gmra.mrb[0].mxu0 %v387
    %v437 = vpop.f32.mrb[0].mxu0
    %v438 = vadd.f32 %v353, %v437
    %v439 = vpop.f32.mrb[0].mxu0
    %v440 = vpop.f32.mrb[0].mxu0
    %v441 = vadd.f32 %v353, %v440
    %v442 = vpop.f32.mrb[0].mxu0
    %443 = vmatprep.mubr.bf16.mxu0 0
    %444 = vmatmul.mubr.bf16.gmra.mrb[0].mxu0 %v388
    %v445 = vpop.f32.mrb[0].mxu0
    %v446 = vadd.f32 %v353, %v445
    %v447 = vpop.f32.mrb[0].mxu0
    %v448 = vpop.f32.mrb[0].mxu0
    %v449 = vadd.f32 %v353, %v448
    %v450 = vpop.f32.mrb[0].mxu0
    %451 = vmatprep.mubr.bf16.mxu0 0
    %452 = vmatmul.mubr.bf16.gmra.mrb[0].mxu0 %v389
    %v453 = vpop.f32.mrb[0].mxu0
    %v454 = vadd.f32 %v353, %v453
    %v455 = vpop.f32.mrb[0].mxu0
    %v456 = vpop.f32.mrb[0].mxu0
    %v457 = vadd.f32 %v353, %v456
    %v458 = vpop.f32.mrb[0].mxu0
    %459 = vmatprep.mubr.bf16.mxu0 0
    %460 = vmatmul.mubr.bf16.gmra.mrb[0].mxu0 %v390
    %v461 = vpop.f32.mrb[0].mxu0
    %v462 = vadd.f32 %v353, %v461
    %v463 = vpop.f32.mrb[0].mxu0
    %v464 = vpop.f32.mrb[0].mxu0
    %v465 = vadd.f32 %v353, %v464
    %v466 = vpop.f32.mrb[0].mxu0
    %467 = vmatprep.mubr.bf16.mxu0 0
    %468 = vmatmul.mubr.bf16.gmra.mrb[0].mxu0 %v391
    %v469 = vpop.f32.mrb[0].mxu0
    %v470 = vadd.f32 %v353, %v469
    %v471 = vpop.f32.mrb[0].mxu0
    %v472 = vpop.f32.mrb[0].mxu0
    %v473 = vadd.f32 %v353, %v472
    %v474 = vpop.f32.mrb[0].mxu0
    %475 = vmatprep.mubr.bf16.mxu0 0
    %476 = vmatmul.mubr.bf16.gmra.mrb[0].mxu0 %v392
    %v477 = vpop.f32.mrb[0].mxu0
    %v478 = vadd.f32 %v353, %v477
    %v479 = vpop.f32.mrb[0].mxu0
    %v480 = vpop.f32.mrb[0].mxu0
    %v481 = vadd.f32 %v353, %v480
    %v482 = vpop.f32.mrb[0].mxu0
    %483 = vmatprep.mubr.bf16.mxu0 0
    %484 = vmatmul.mubr.bf16.gmra.mrb[0].mxu0 %v393
    %v485 = vpop.f32.mrb[0].mxu0
    %v486 = vadd.f32 %v353, %v485
    %v487 = vpop.f32.mrb[0].mxu0
    %v488 = vpop.f32.mrb[0].mxu0
    %v489 = vadd.f32 %v353, %v488
    %v490 = vpop.f32.mrb[0].mxu0
    %491 = vmatprep.mubr.bf16.mxu0 0
    %492 = vmatmul.mubr.bf16.gmra.mrb[0].mxu0 %v394
    %v493 = vpop.f32.mrb[0].mxu0
    %v494 = vadd.f32 %v353, %v493
    %v495 = vpop.f32.mrb[0].mxu0
    %v496 = vpop.f32.mrb[0].mxu0
    %v497 = vadd.f32 %v353, %v496
    %v498 = vpop.f32.mrb[0].mxu0
    %499 = vdwg.mxu0
    %v500 = vmax.f32 %v438, 0.0
    %v501 = vmax.f32 %v441, 0.0
    %v502 = vmax.f32 %v446, 0.0
    %v503 = vmax.f32 %v449, 0.0
    %v504 = vmax.f32 %v454, 0.0
    %v505 = vmax.f32 %v457, 0.0
    %v506 = vmax.f32 %v462, 0.0
    %v507 = vmax.f32 %v465, 0.0
    %v508 = vmax.f32 %v470, 0.0
    %v509 = vmax.f32 %v473, 0.0
    %v510 = vmax.f32 %v478, 0.0
    %v511 = vmax.f32 %v481, 0.0
    %v512 = vmax.f32 %v486, 0.0
    %v513 = vmax.f32 %v489, 0.0
    %v514 = vmax.f32 %v494, 0.0
    %v515 = vmax.f32 %v497, 0.0
    %v516 = vpack.c.bf16 %v501, %v500
    %v517 = vpack.c.bf16 %v503, %v502
    %v518 = vpack.c.bf16 %v505, %v504
    %v519 = vpack.c.bf16 %v507, %v506
    %v520 = vpack.c.bf16 %v509, %v508
    %v521 = vpack.c.bf16 %v511, %v510
    %v522 = vpack.c.bf16 %v513, %v512
    %v523 = vpack.c.bf16 %v515, %v514
    %v524 = vld [vmem:[#allocation8] sm:$0xf]
    %v525 = vld [vmem:[#allocation8 + $0x4] sm:$0xf]
    %v526 = vld [vmem:[#allocation8 + $0x8] sm:$0xf]
    %v527 = vld [vmem:[#allocation8 + $0xc] sm:$0xf]
    %v528 = vld [vmem:[#allocation8 + $0x10] sm:$0xf]
    %v529 = vld [vmem:[#allocation8 + $0x14] sm:$0xf]
    %v530 = vld [vmem:[#allocation8 + $0x18] sm:$0xf]
    %v531 = vld [vmem:[#allocation8 + $0x1c] sm:$0xf]
    %v532 = vld [vmem:[#allocation8 + $0x20] sm:$0xf]
    %v533 = vld [vmem:[#allocation8 + $0x24] sm:$0xf]
    %v534 = vld [vmem:[#allocation8 + $0x28] sm:$0xf]
    %v535 = vld [vmem:[#allocation8 + $0x2c] sm:$0xf]
    %v536 = vld [vmem:[#allocation8 + $0x30] sm:$0xf]
    %v537 = vld [vmem:[#allocation8 + $0x34] sm:$0xf]
    %v538 = vld [vmem:[#allocation8 + $0x38] sm:$0xf]
    %v539 = vld [vmem:[#allocation8 + $0x3c] sm:$0xf]
    %v556 = vunpack.c.l.b16 %v524
    %v557 = vunpack.c.l.b16 %v525
    %v558 = vunpack.c.l.b16 %v526
    %v559 = vunpack.c.l.b16 %v527
    %v560 = vunpack.c.l.b16 %v528
    %v561 = vunpack.c.l.b16 %v529
    %v562 = vunpack.c.l.b16 %v530
    %v563 = vunpack.c.l.b16 %v531
    %v564 = vunpack.c.l.b16 %v532
    %v565 = vunpack.c.l.b16 %v533
    %v566 = vunpack.c.l.b16 %v534
    %v567 = vunpack.c.l.b16 %v535
    %v568 = vunpack.c.l.b16 %v536
    %v569 = vunpack.c.l.b16 %v537
    %v570 = vunpack.c.l.b16 %v538
    %v571 = vunpack.c.l.b16 %v539
    %v572 = vpack.c.b16 %v557, %v556
    %v573 = vpack.c.b16 %v559, %v558
    %v574 = vpack.c.b16 %v561, %v560
    %v575 = vpack.c.b16 %v563, %v562
    %v576 = vpack.c.b16 %v565, %v564
    %v577 = vpack.c.b16 %v567, %v566
    %v578 = vpack.c.b16 %v569, %v568
    %v579 = vpack.c.b16 %v571, %v570
    %588 = vmatprep.subr.bf16.mxu0 0
    %589 = vmatpush1.bf16.msra.mxu0 %v572
    %590 = vmatprep.subr.bf16.mxu0 0
    %591 = vmatpush1.bf16.msra.mxu0 %v573
    %592 = vmatprep.subr.bf16.mxu0 0
    %593 = vmatpush1.bf16.msra.mxu0 %v574
    %594 = vmatprep.subr.bf16.mxu0 0
    %595 = vmatpush1.bf16.msra.mxu0 %v575
    %596 = vmatprep.subr.bf16.mxu0 0
    %597 = vmatpush1.bf16.msra.mxu0 %v576
    %598 = vmatprep.subr.bf16.mxu0 0
    %599 = vmatpush1.bf16.msra.mxu0 %v577
    %600 = vmatprep.subr.bf16.mxu0 0
    %601 = vmatpush1.bf16.msra.mxu0 %v578
    %602 = vmatprep.subr.bf16.mxu0 0
    %603 = vmatpush1.bf16.msra.mxu0 %v579
    %604 = vmatprep.subr.bf16.mxu0 0
    %605 = vmatpush1.bf16.msra.mxu0 0
    %606 = vmatprep.subr.bf16.mxu0 0
    %607 = vmatpush1.bf16.msra.mxu0 0
    %608 = vmatprep.subr.bf16.mxu0 0
    %609 = vmatpush1.bf16.msra.mxu0 0
    %610 = vmatprep.subr.bf16.mxu0 0
    %611 = vmatpush1.bf16.msra.mxu0 0
    %612 = vmatprep.subr.bf16.mxu0 0
    %613 = vmatpush1.bf16.msra.mxu0 0
    %614 = vmatprep.subr.bf16.mxu0 0
    %615 = vmatpush1.bf16.msra.mxu0 0
    %616 = vmatprep.subr.bf16.mxu0 0
    %617 = vmatpush1.bf16.msra.mxu0 0
    %618 = vmatprep.subr.bf16.mxu0 0
    %619 = vmatpush1.bf16.msra.mxu0 0
    %620 = vmatprep.mubr.bf16.mxu0 0
    %621 = vmatmul.mubr.bf16.gmra.mrb[0].mxu0 %v516
    %v622 = vpop.f32.mrb[0].mxu0
    %v623 = vadd.f32 0.0, %v622
    %v624 = vpop.f32.mrb[0].mxu0
    %v625 = vpop.f32.mrb[0].mxu0
    %v626 = vadd.f32 0.0, %v625
    %v627 = vpop.f32.mrb[0].mxu0
    %628 = vmatprep.mubr.bf16.mxu0 0
    %629 = vmatmul.mubr.bf16.gmra.mrb[0].mxu0 %v517
    %v630 = vpop.f32.mrb[0].mxu0
    %v631 = vadd.f32 0.0, %v630
    %v632 = vpop.f32.mrb[0].mxu0
    %v633 = vpop.f32.mrb[0].mxu0
    %v634 = vadd.f32 0.0, %v633
    %v635 = vpop.f32.mrb[0].mxu0
    %636 = vmatprep.mubr.bf16.mxu0 0
    %637 = vmatmul.mubr.bf16.gmra.mrb[0].mxu0 %v518
    %v638 = vpop.f32.mrb[0].mxu0
    %v639 = vadd.f32 0.0, %v638
    %v640 = vpop.f32.mrb[0].mxu0
    %v641 = vpop.f32.mrb[0].mxu0
    %v642 = vadd.f32 0.0, %v641
    %v643 = vpop.f32.mrb[0].mxu0
    %644 = vmatprep.mubr.bf16.mxu0 0
    %645 = vmatmul.mubr.bf16.gmra.mrb[0].mxu0 %v519
    %v646 = vpop.f32.mrb[0].mxu0
    %v647 = vadd.f32 0.0, %v646
    %v648 = vpop.f32.mrb[0].mxu0
    %v649 = vpop.f32.mrb[0].mxu0
    %v650 = vadd.f32 0.0, %v649
    %v651 = vpop.f32.mrb[0].mxu0
    %652 = vmatprep.mubr.bf16.mxu0 0
    %653 = vmatmul.mubr.bf16.gmra.mrb[0].mxu0 %v520
    %v654 = vpop.f32.mrb[0].mxu0
    %v655 = vadd.f32 0.0, %v654
    %v656 = vpop.f32.mrb[0].mxu0
    %v657 = vpop.f32.mrb[0].mxu0
    %v658 = vadd.f32 0.0, %v657
    %v659 = vpop.f32.mrb[0].mxu0
    %660 = vmatprep.mubr.bf16.mxu0 0
    %661 = vmatmul.mubr.bf16.gmra.mrb[0].mxu0 %v521
    %v662 = vpop.f32.mrb[0].mxu0
    %v663 = vadd.f32 0.0, %v662
    %v664 = vpop.f32.mrb[0].mxu0
    %v665 = vpop.f32.mrb[0].mxu0
    %v666 = vadd.f32 0.0, %v665
    %v667 = vpop.f32.mrb[0].mxu0
    %668 = vmatprep.mubr.bf16.mxu0 0
    %669 = vmatmul.mubr.bf16.gmra.mrb[0].mxu0 %v522
    %v670 = vpop.f32.mrb[0].mxu0
    %v671 = vadd.f32 0.0, %v670
    %v672 = vpop.f32.mrb[0].mxu0
    %v673 = vpop.f32.mrb[0].mxu0
    %v674 = vadd.f32 0.0, %v673
    %v675 = vpop.f32.mrb[0].mxu0
    %676 = vmatprep.mubr.bf16.mxu0 0
    %677 = vmatmul.mubr.bf16.gmra.mrb[0].mxu0 %v523
    %v678 = vpop.f32.mrb[0].mxu0
    %v679 = vadd.f32 0.0, %v678
    %v680 = vpop.f32.mrb[0].mxu0
    %v681 = vpop.f32.mrb[0].mxu0
    %v682 = vadd.f32 0.0, %v681
    %v683 = vpop.f32.mrb[0].mxu0
    %684 = vdwg.mxu0
    %v685 = vpack.c.bf16 %v626, %v623
    %v686 = vpack.c.bf16 %v634, %v631
    %v687 = vpack.c.bf16 %v642, %v639
    %v688 = vpack.c.bf16 %v650, %v647
    %v689 = vpack.c.bf16 %v658, %v655
    %v690 = vpack.c.bf16 %v666, %v663
    %v691 = vpack.c.bf16 %v674, %v671
    %v692 = vpack.c.bf16 %v682, %v679
    %v693 = vld [vmem:[%s5] sm:$0x1]
    %v695 = vlaneseq
    %v696 = vshrl.u32 %v695, 7
    %v697 = vsub.s32 0, %v696
    %v698 = vrot.slane %v693, %v697
    %700 = vmatprep.subr.bf16.mxu0 0
    %701 = vmatpush1.bf16.msra.mxu0 %v685
    %702 = vmatprep.subr.bf16.mxu0 0
    %703 = vmatpush1.bf16.msra.mxu0 %v686
    %704 = vmatprep.subr.bf16.mxu0 0
    %705 = vmatpush1.bf16.msra.mxu0 %v687
    %706 = vmatprep.subr.bf16.mxu0 0
    %707 = vmatpush1.bf16.msra.mxu0 %v688
    %708 = vmatprep.subr.bf16.mxu0 0
    %709 = vmatpush1.bf16.msra.mxu0 %v689
    %710 = vmatprep.subr.bf16.mxu0 0
    %711 = vmatpush1.bf16.msra.mxu0 %v690
    %712 = vmatprep.subr.bf16.mxu0 0
    %713 = vmatpush1.bf16.msra.mxu0 %v691
    %714 = vmatprep.subr.bf16.mxu0 0
    %715 = vmatpush1.bf16.msra.mxu0 %v692
    %716 = vmatprep.subr.bf16.mxu0 0
    %717 = vmatpush1.bf16.msra.mxu0 0
    %718 = vmatprep.subr.bf16.mxu0 0
    %719 = vmatpush1.bf16.msra.mxu0 0
    %720 = vmatprep.subr.bf16.mxu0 0
    %721 = vmatpush1.bf16.msra.mxu0 0
    %722 = vmatprep.subr.bf16.mxu0 0
    %723 = vmatpush1.bf16.msra.mxu0 0
    %724 = vmatprep.subr.bf16.mxu0 0
    %725 = vmatpush1.bf16.msra.mxu0 0
    %726 = vmatprep.subr.bf16.mxu0 0
    %727 = vmatpush1.bf16.msra.mxu0 0
    %728 = vmatprep.subr.bf16.mxu0 0
    %729 = vmatpush1.bf16.msra.mxu0 0
    %730 = vmatprep.subr.bf16.mxu0 0
    %731 = vmatpush1.bf16.msra.mxu0 0
    %732 = vmatprep.mubr.bf16.mxu0 0
    %733 = vmatmul.mubr.bf16.gmra.mrb[0].mxu0 %v387
    %v734 = vpop.f32.mrb[0].mxu0
    %v735 = vadd.f32 %v698, %v734
    %v736 = vpop.f32.mrb[0].mxu0
    %v737 = vpop.f32.mrb[0].mxu0
    %v738 = vadd.f32 %v698, %v737
    %v739 = vpop.f32.mrb[0].mxu0
    %740 = vmatprep.mubr.bf16.mxu0 0
    %741 = vmatmul.mubr.bf16.gmra.mrb[0].mxu0 %v388
    %v742 = vpop.f32.mrb[0].mxu0
    %v743 = vadd.f32 %v698, %v742
    %v744 = vpop.f32.mrb[0].mxu0
    %v745 = vpop.f32.mrb[0].mxu0
    %v746 = vadd.f32 %v698, %v745
    %v747 = vpop.f32.mrb[0].mxu0
    %748 = vmatprep.mubr.bf16.mxu0 0
    %749 = vmatmul.mubr.bf16.gmra.mrb[0].mxu0 %v389
    %v750 = vpop.f32.mrb[0].mxu0
    %v751 = vadd.f32 %v698, %v750
    %v752 = vpop.f32.mrb[0].mxu0
    %v753 = vpop.f32.mrb[0].mxu0
    %v754 = vadd.f32 %v698, %v753
    %v755 = vpop.f32.mrb[0].mxu0
    %756 = vmatprep.mubr.bf16.mxu0 0
    %757 = vmatmul.mubr.bf16.gmra.mrb[0].mxu0 %v390
    %v758 = vpop.f32.mrb[0].mxu0
    %v759 = vadd.f32 %v698, %v758
    %v760 = vpop.f32.mrb[0].mxu0
    %v761 = vpop.f32.mrb[0].mxu0
    %v762 = vadd.f32 %v698, %v761
    %v763 = vpop.f32.mrb[0].mxu0
    %764 = vmatprep.mubr.bf16.mxu0 0
    %765 = vmatmul.mubr.bf16.gmra.mrb[0].mxu0 %v391
    %v766 = vpop.f32.mrb[0].mxu0
    %v767 = vadd.f32 %v698, %v766
    %v768 = vpop.f32.mrb[0].mxu0
    %v769 = vpop.f32.mrb[0].mxu0
    %v770 = vadd.f32 %v698, %v769
    %v771 = vpop.f32.mrb[0].mxu0
    %772 = vmatprep.mubr.bf16.mxu0 0
    %773 = vmatmul.mubr.bf16.gmra.mrb[0].mxu0 %v392
    %v774 = vpop.f32.mrb[0].mxu0
    %v775 = vadd.f32 %v698, %v774
    %v776 = vpop.f32.mrb[0].mxu0
    %v777 = vpop.f32.mrb[0].mxu0
    %v778 = vadd.f32 %v698, %v777
    %v779 = vpop.f32.mrb[0].mxu0
    %780 = vmatprep.mubr.bf16.mxu0 0
    %781 = vmatmul.mubr.bf16.gmra.mrb[0].mxu0 %v393
    %v782 = vpop.f32.mrb[0].mxu0
    %v783 = vadd.f32 %v698, %v782
    %v784 = vpop.f32.mrb[0].mxu0
    %v785 = vpop.f32.mrb[0].mxu0
    %v786 = vadd.f32 %v698, %v785
    %v787 = vpop.f32.mrb[0].mxu0
    %788 = vmatprep.mubr.bf16.mxu0 0
    %789 = vmatmul.mubr.bf16.gmra.mrb[0].mxu0 %v394
    %v790 = vpop.f32.mrb[0].mxu0
    %v791 = vadd.f32 %v698, %v790
    %v792 = vpop.f32.mrb[0].mxu0
    %v793 = vpop.f32.mrb[0].mxu0
    %v794 = vadd.f32 %v698, %v793
    %v795 = vpop.f32.mrb[0].mxu0
    %796 = vdwg.mxu0
    %v797 = vmax.f32 %v735, 0.0
    %v798 = vmax.f32 %v738, 0.0
    %v799 = vmax.f32 %v743, 0.0
    %v800 = vmax.f32 %v746, 0.0
    %v801 = vmax.f32 %v751, 0.0
    %v802 = vmax.f32 %v754, 0.0
    %v803 = vmax.f32 %v759, 0.0
    %v804 = vmax.f32 %v762, 0.0
    %v805 = vmax.f32 %v767, 0.0
    %v806 = vmax.f32 %v770, 0.0
    %v807 = vmax.f32 %v775, 0.0
    %v808 = vmax.f32 %v778, 0.0
    %v809 = vmax.f32 %v783, 0.0
    %v810 = vmax.f32 %v786, 0.0
    %v811 = vmax.f32 %v791, 0.0
    %v812 = vmax.f32 %v794, 0.0
    %v813 = vpack.c.bf16 %v798, %v797
    %v814 = vpack.c.bf16 %v800, %v799
    %v815 = vpack.c.bf16 %v802, %v801
    %v816 = vpack.c.bf16 %v804, %v803
    %v817 = vpack.c.bf16 %v806, %v805
    %v818 = vpack.c.bf16 %v808, %v807
    %v819 = vpack.c.bf16 %v810, %v809
    %v820 = vpack.c.bf16 %v812, %v811
    %v821 = vld [vmem:[#allocation10] sm:$0xf]
    %v822 = vld [vmem:[#allocation10 + $0x4] sm:$0xf]
    %v823 = vld [vmem:[#allocation10 + $0x8] sm:$0xf]
    %v824 = vld [vmem:[#allocation10 + $0xc] sm:$0xf]
    %v825 = vld [vmem:[#allocation10 + $0x10] sm:$0xf]
    %v826 = vld [vmem:[#allocation10 + $0x14] sm:$0xf]
    %v827 = vld [vmem:[#allocation10 + $0x18] sm:$0xf]
    %v828 = vld [vmem:[#allocation10 + $0x1c] sm:$0xf]
    %v829 = vld [vmem:[#allocation10 + $0x20] sm:$0xf]
    %v830 = vld [vmem:[#allocation10 + $0x24] sm:$0xf]
    %v831 = vld [vmem:[#allocation10 + $0x28] sm:$0xf]
    %v832 = vld [vmem:[#allocation10 + $0x2c] sm:$0xf]
    %v833 = vld [vmem:[#allocation10 + $0x30] sm:$0xf]
    %v834 = vld [vmem:[#allocation10 + $0x34] sm:$0xf]
    %v835 = vld [vmem:[#allocation10 + $0x38] sm:$0xf]
    %v836 = vld [vmem:[#allocation10 + $0x3c] sm:$0xf]
    %v853 = vunpack.c.l.b16 %v821
    %v854 = vunpack.c.l.b16 %v822
    %v855 = vunpack.c.l.b16 %v823
    %v856 = vunpack.c.l.b16 %v824
    %v857 = vunpack.c.l.b16 %v825
    %v858 = vunpack.c.l.b16 %v826
    %v859 = vunpack.c.l.b16 %v827
    %v860 = vunpack.c.l.b16 %v828
    %v861 = vunpack.c.l.b16 %v829
    %v862 = vunpack.c.l.b16 %v830
    %v863 = vunpack.c.l.b16 %v831
    %v864 = vunpack.c.l.b16 %v832
    %v865 = vunpack.c.l.b16 %v833
    %v866 = vunpack.c.l.b16 %v834
    %v867 = vunpack.c.l.b16 %v835
    %v868 = vunpack.c.l.b16 %v836
    %v869 = vpack.c.b16 %v854, %v853
    %v870 = vpack.c.b16 %v856, %v855
    %v871 = vpack.c.b16 %v858, %v857
    %v872 = vpack.c.b16 %v860, %v859
    %v873 = vpack.c.b16 %v862, %v861
    %v874 = vpack.c.b16 %v864, %v863
    %v875 = vpack.c.b16 %v866, %v865
    %v876 = vpack.c.b16 %v868, %v867
    %885 = vmatprep.subr.bf16.mxu0 0
    %886 = vmatpush1.bf16.msra.mxu0 %v869
    %887 = vmatprep.subr.bf16.mxu0 0
    %888 = vmatpush1.bf16.msra.mxu0 %v870
    %889 = vmatprep.subr.bf16.mxu0 0
    %890 = vmatpush1.bf16.msra.mxu0 %v871
    %891 = vmatprep.subr.bf16.mxu0 0
    %892 = vmatpush1.bf16.msra.mxu0 %v872
    %893 = vmatprep.subr.bf16.mxu0 0
    %894 = vmatpush1.bf16.msra.mxu0 %v873
    %895 = vmatprep.subr.bf16.mxu0 0
    %896 = vmatpush1.bf16.msra.mxu0 %v874
    %897 = vmatprep.subr.bf16.mxu0 0
    %898 = vmatpush1.bf16.msra.mxu0 %v875
    %899 = vmatprep.subr.bf16.mxu0 0
    %900 = vmatpush1.bf16.msra.mxu0 %v876
    %901 = vmatprep.subr.bf16.mxu0 0
    %902 = vmatpush1.bf16.msra.mxu0 0
    %903 = vmatprep.subr.bf16.mxu0 0
    %904 = vmatpush1.bf16.msra.mxu0 0
    %905 = vmatprep.subr.bf16.mxu0 0
    %906 = vmatpush1.bf16.msra.mxu0 0
    %907 = vmatprep.subr.bf16.mxu0 0
    %908 = vmatpush1.bf16.msra.mxu0 0
    %909 = vmatprep.subr.bf16.mxu0 0
    %910 = vmatpush1.bf16.msra.mxu0 0
    %911 = vmatprep.subr.bf16.mxu0 0
    %912 = vmatpush1.bf16.msra.mxu0 0
    %913 = vmatprep.subr.bf16.mxu0 0
    %914 = vmatpush1.bf16.msra.mxu0 0
    %915 = vmatprep.subr.bf16.mxu0 0
    %916 = vmatpush1.bf16.msra.mxu0 0
    %917 = vmatprep.mubr.bf16.mxu0 0
    %918 = vmatmul.mubr.bf16.gmra.mrb[0].mxu0 %v813
    %v919 = vpop.f32.mrb[0].mxu0
    %v920 = vadd.f32 0.0, %v919
    %v921 = vpop.f32.mrb[0].mxu0
    %v922 = vpop.f32.mrb[0].mxu0
    %v923 = vadd.f32 0.0, %v922
    %v924 = vpop.f32.mrb[0].mxu0
    %925 = vmatprep.mubr.bf16.mxu0 0
    %926 = vmatmul.mubr.bf16.gmra.mrb[0].mxu0 %v814
    %v927 = vpop.f32.mrb[0].mxu0
    %v928 = vadd.f32 0.0, %v927
    %v929 = vpop.f32.mrb[0].mxu0
    %v930 = vpop.f32.mrb[0].mxu0
    %v931 = vadd.f32 0.0, %v930
    %v932 = vpop.f32.mrb[0].mxu0
    %933 = vmatprep.mubr.bf16.mxu0 0
    %934 = vmatmul.mubr.bf16.gmra.mrb[0].mxu0 %v815
    %v935 = vpop.f32.mrb[0].mxu0
    %v936 = vadd.f32 0.0, %v935
    %v937 = vpop.f32.mrb[0].mxu0
    %v938 = vpop.f32.mrb[0].mxu0
    %v939 = vadd.f32 0.0, %v938
    %v940 = vpop.f32.mrb[0].mxu0
    %941 = vmatprep.mubr.bf16.mxu0 0
    %942 = vmatmul.mubr.bf16.gmra.mrb[0].mxu0 %v816
    %v943 = vpop.f32.mrb[0].mxu0
    %v944 = vadd.f32 0.0, %v943
    %v945 = vpop.f32.mrb[0].mxu0
    %v946 = vpop.f32.mrb[0].mxu0
    %v947 = vadd.f32 0.0, %v946
    %v948 = vpop.f32.mrb[0].mxu0
    %949 = vmatprep.mubr.bf16.mxu0 0
    %950 = vmatmul.mubr.bf16.gmra.mrb[0].mxu0 %v817
    %v951 = vpop.f32.mrb[0].mxu0
    %v952 = vadd.f32 0.0, %v951
    %v953 = vpop.f32.mrb[0].mxu0
    %v954 = vpop.f32.mrb[0].mxu0
    %v955 = vadd.f32 0.0, %v954
    %v956 = vpop.f32.mrb[0].mxu0
    %957 = vmatprep.mubr.bf16.mxu0 0
    %958 = vmatmul.mubr.bf16.gmra.mrb[0].mxu0 %v818
    %v959 = vpop.f32.mrb[0].mxu0
    %v960 = vadd.f32 0.0, %v959
    %v961 = vpop.f32.mrb[0].mxu0
    %v962 = vpop.f32.mrb[0].mxu0
    %v963 = vadd.f32 0.0, %v962
    %v964 = vpop.f32.mrb[0].mxu0
    %965 = vmatprep.mubr.bf16.mxu0 0
    %966 = vmatmul.mubr.bf16.gmra.mrb[0].mxu0 %v819
    %v967 = vpop.f32.mrb[0].mxu0
    %v968 = vadd.f32 0.0, %v967
    %v969 = vpop.f32.mrb[0].mxu0
    %v970 = vpop.f32.mrb[0].mxu0
    %v971 = vadd.f32 0.0, %v970
    %v972 = vpop.f32.mrb[0].mxu0
    %973 = vmatprep.mubr.bf16.mxu0 0
    %974 = vmatmul.mubr.bf16.gmra.mrb[0].mxu0 %v820
    %v975 = vpop.f32.mrb[0].mxu0
    %v976 = vadd.f32 0.0, %v975
    %v977 = vpop.f32.mrb[0].mxu0
    %v978 = vpop.f32.mrb[0].mxu0
    %v979 = vadd.f32 0.0, %v978
    %v980 = vpop.f32.mrb[0].mxu0
    %981 = vdwg.mxu0
    %v982 = vpack.c.bf16 %v923, %v920
    %v983 = vpack.c.bf16 %v931, %v928
    %v984 = vpack.c.bf16 %v939, %v936
    %v985 = vpack.c.bf16 %v947, %v944
    %v986 = vpack.c.bf16 %v955, %v952
    %v987 = vpack.c.bf16 %v963, %v960
    %v988 = vpack.c.bf16 %v971, %v968
    %v989 = vpack.c.bf16 %v979, %v976
    %v990 = vld [vmem:[%s7] sm:$0x1]
    %v992 = vlaneseq
    %v993 = vshrl.u32 %v992, 7
    %v994 = vsub.s32 0, %v993
    %v995 = vrot.slane %v990, %v994
    %997 = vmatprep.subr.bf16.mxu0 0
    %998 = vmatpush1.bf16.msra.mxu0 %v982
    %999 = vmatprep.subr.bf16.mxu0 0
    %1000 = vmatpush1.bf16.msra.mxu0 %v983
    %1001 = vmatprep.subr.bf16.mxu0 0
    %1002 = vmatpush1.bf16.msra.mxu0 %v984
    %1003 = vmatprep.subr.bf16.mxu0 0
    %1004 = vmatpush1.bf16.msra.mxu0 %v985
    %1005 = vmatprep.subr.bf16.mxu0 0
    %1006 = vmatpush1.bf16.msra.mxu0 %v986
    %1007 = vmatprep.subr.bf16.mxu0 0
    %1008 = vmatpush1.bf16.msra.mxu0 %v987
    %1009 = vmatprep.subr.bf16.mxu0 0
    %1010 = vmatpush1.bf16.msra.mxu0 %v988
    %1011 = vmatprep.subr.bf16.mxu0 0
    %1012 = vmatpush1.bf16.msra.mxu0 %v989
    %1013 = vmatprep.subr.bf16.mxu0 0
    %1014 = vmatpush1.bf16.msra.mxu0 0
    %1015 = vmatprep.subr.bf16.mxu0 0
    %1016 = vmatpush1.bf16.msra.mxu0 0
    %1017 = vmatprep.subr.bf16.mxu0 0
    %1018 = vmatpush1.bf16.msra.mxu0 0
    %1019 = vmatprep.subr.bf16.mxu0 0
    %1020 = vmatpush1.bf16.msra.mxu0 0
    %1021 = vmatprep.subr.bf16.mxu0 0
    %1022 = vmatpush1.bf16.msra.mxu0 0
    %1023 = vmatprep.subr.bf16.mxu0 0
    %1024 = vmatpush1.bf16.msra.mxu0 0
    %1025 = vmatprep.subr.bf16.mxu0 0
    %1026 = vmatpush1.bf16.msra.mxu0 0
    %1027 = vmatprep.subr.bf16.mxu0 0
    %1028 = vmatpush1.bf16.msra.mxu0 0
    %1029 = vmatprep.mubr.bf16.mxu0 0
    %1030 = vmatmul.mubr.bf16.gmra.mrb[0].mxu0 %v387
    %v1031 = vpop.f32.mrb[0].mxu0
    %v1032 = vadd.f32 %v995, %v1031
    %v1033 = vpop.f32.mrb[0].mxu0
    %v1034 = vpop.f32.mrb[0].mxu0
    %v1035 = vadd.f32 %v995, %v1034
    %v1036 = vpop.f32.mrb[0].mxu0
    %1037 = vmatprep.mubr.bf16.mxu0 0
    %1038 = vmatmul.mubr.bf16.gmra.mrb[0].mxu0 %v388
    %v1039 = vpop.f32.mrb[0].mxu0
    %v1040 = vadd.f32 %v995, %v1039
    %v1041 = vpop.f32.mrb[0].mxu0
    %v1042 = vpop.f32.mrb[0].mxu0
    %v1043 = vadd.f32 %v995, %v1042
    %v1044 = vpop.f32.mrb[0].mxu0
    %1045 = vmatprep.mubr.bf16.mxu0 0
    %1046 = vmatmul.mubr.bf16.gmra.mrb[0].mxu0 %v389
    %v1047 = vpop.f32.mrb[0].mxu0
    %v1048 = vadd.f32 %v995, %v1047
    %v1049 = vpop.f32.mrb[0].mxu0
    %v1050 = vpop.f32.mrb[0].mxu0
    %v1051 = vadd.f32 %v995, %v1050
    %v1052 = vpop.f32.mrb[0].mxu0
    %1053 = vmatprep.mubr.bf16.mxu0 0
    %1054 = vmatmul.mubr.bf16.gmra.mrb[0].mxu0 %v390
    %v1055 = vpop.f32.mrb[0].mxu0
    %v1056 = vadd.f32 %v995, %v1055
    %v1057 = vpop.f32.mrb[0].mxu0
    %v1058 = vpop.f32.mrb[0].mxu0
    %v1059 = vadd.f32 %v995, %v1058
    %v1060 = vpop.f32.mrb[0].mxu0
    %1061 = vmatprep.mubr.bf16.mxu0 0
    %1062 = vmatmul.mubr.bf16.gmra.mrb[0].mxu0 %v391
    %v1063 = vpop.f32.mrb[0].mxu0
    %v1064 = vadd.f32 %v995, %v1063
    %v1065 = vpop.f32.mrb[0].mxu0
    %v1066 = vpop.f32.mrb[0].mxu0
    %v1067 = vadd.f32 %v995, %v1066
    %v1068 = vpop.f32.mrb[0].mxu0
    %1069 = vmatprep.mubr.bf16.mxu0 0
    %1070 = vmatmul.mubr.bf16.gmra.mrb[0].mxu0 %v392
    %v1071 = vpop.f32.mrb[0].mxu0
    %v1072 = vadd.f32 %v995, %v1071
    %v1073 = vpop.f32.mrb[0].mxu0
    %v1074 = vpop.f32.mrb[0].mxu0
    %v1075 = vadd.f32 %v995, %v1074
    %v1076 = vpop.f32.mrb[0].mxu0
    %1077 = vmatprep.mubr.bf16.mxu0 0
    %1078 = vmatmul.mubr.bf16.gmra.mrb[0].mxu0 %v393
    %v1079 = vpop.f32.mrb[0].mxu0
    %v1080 = vadd.f32 %v995, %v1079
    %v1081 = vpop.f32.mrb[0].mxu0
    %v1082 = vpop.f32.mrb[0].mxu0
    %v1083 = vadd.f32 %v995, %v1082
    %v1084 = vpop.f32.mrb[0].mxu0
    %1085 = vmatprep.mubr.bf16.mxu0 0
    %1086 = vmatmul.mubr.bf16.gmra.mrb[0].mxu0 %v394
    %v1087 = vpop.f32.mrb[0].mxu0
    %v1088 = vadd.f32 %v995, %v1087
    %v1089 = vpop.f32.mrb[0].mxu0
    %v1090 = vpop.f32.mrb[0].mxu0
    %v1091 = vadd.f32 %v995, %v1090
    %v1092 = vpop.f32.mrb[0].mxu0
    %1093 = vdwg.mxu0
    %v1094 = vlaneseq
    %v1095 = vand.u32 %v1094, 127
    %vm1096 = vcmp.lt.s32.totalorder %v1095, 4
    %v1097 = vsel %vm1096, %v1032, -inf
    %v1098 = vsel %vm1096, %v1035, -inf
    %v1099 = vsel %vm1096, %v1040, -inf
    %v1100 = vsel %vm1096, %v1043, -inf
    %v1101 = vsel %vm1096, %v1048, -inf
    %v1102 = vsel %vm1096, %v1051, -inf
    %v1103 = vsel %vm1096, %v1056, -inf
    %v1104 = vsel %vm1096, %v1059, -inf
    %v1105 = vsel %vm1096, %v1064, -inf
    %v1106 = vsel %vm1096, %v1067, -inf
    %v1107 = vsel %vm1096, %v1072, -inf
    %v1108 = vsel %vm1096, %v1075, -inf
    %v1109 = vsel %vm1096, %v1080, -inf
    %v1110 = vsel %vm1096, %v1083, -inf
    %v1111 = vsel %vm1096, %v1088, -inf
    %v1112 = vsel %vm1096, %v1091, -inf
    %1113 = vmax.xlane.f32.xlu0 %v1097
    %v1114 = vpop.xlane.xlu0 %1113
    %1115 = vmax.xlane.f32.xlu0 %v1098
    %v1116 = vpop.xlane.xlu0 %1115
    %1117 = vmax.xlane.f32.xlu0 %v1099
    %v1118 = vpop.xlane.xlu0 %1117
    %1119 = vmax.xlane.f32.xlu0 %v1100
    %v1120 = vpop.xlane.xlu0 %1119
    %1121 = vmax.xlane.f32.xlu0 %v1101
    %v1122 = vpop.xlane.xlu0 %1121
    %1123 = vmax.xlane.f32.xlu0 %v1102
    %v1124 = vpop.xlane.xlu0 %1123
    %1125 = vmax.xlane.f32.xlu0 %v1103
    %v1126 = vpop.xlane.xlu0 %1125
    %1127 = vmax.xlane.f32.xlu0 %v1104
    %v1128 = vpop.xlane.xlu0 %1127
    %1129 = vmax.xlane.f32.xlu0 %v1105
    %v1130 = vpop.xlane.xlu0 %1129
    %1131 = vmax.xlane.f32.xlu0 %v1106
    %v1132 = vpop.xlane.xlu0 %1131
    %1133 = vmax.xlane.f32.xlu0 %v1107
    %v1134 = vpop.xlane.xlu0 %1133
    %1135 = vmax.xlane.f32.xlu0 %v1108
    %v1136 = vpop.xlane.xlu0 %1135
    %1137 = vmax.xlane.f32.xlu0 %v1109
    %v1138 = vpop.xlane.xlu0 %1137
    %1139 = vmax.xlane.f32.xlu0 %v1110
    %v1140 = vpop.xlane.xlu0 %1139
    %1141 = vmax.xlane.f32.xlu0 %v1111
    %v1142 = vpop.xlane.xlu0 %1141
    %1143 = vmax.xlane.f32.xlu0 %v1112
    %v1144 = vpop.xlane.xlu0 %1143
    %v1145 = vsub.f32 %v1097, %v1114
    %v1146 = vsub.f32 %v1098, %v1116
    %v1147 = vsub.f32 %v1099, %v1118
    %v1148 = vsub.f32 %v1100, %v1120
    %v1149 = vsub.f32 %v1101, %v1122
    %v1150 = vsub.f32 %v1102, %v1124
    %v1151 = vsub.f32 %v1103, %v1126
    %v1152 = vsub.f32 %v1104, %v1128
    %v1153 = vsub.f32 %v1105, %v1130
    %v1154 = vsub.f32 %v1106, %v1132
    %v1155 = vsub.f32 %v1107, %v1134
    %v1156 = vsub.f32 %v1108, %v1136
    %v1157 = vsub.f32 %v1109, %v1138
    %v1158 = vsub.f32 %v1110, %v1140
    %v1159 = vsub.f32 %v1111, %v1142
    %v1160 = vsub.f32 %v1112, %v1144
    %v1161 = vmul.f32 %v1145, 1.442695
    %v1162 = vpow.pop %v1161
    %v1163 = vmul.f32 %v1146, 1.442695
    %v1164 = vpow.pop %v1163
    %v1165 = vmul.f32 %v1147, 1.442695
    %v1166 = vpow.pop %v1165
    %v1167 = vmul.f32 %v1148, 1.442695
    %v1168 = vpow.pop %v1167
    %v1169 = vmul.f32 %v1149, 1.442695
    %v1170 = vpow.pop %v1169
    %v1171 = vmul.f32 %v1150, 1.442695
    %v1172 = vpow.pop %v1171
    %v1173 = vmul.f32 %v1151, 1.442695
    %v1174 = vpow.pop %v1173
    %v1175 = vmul.f32 %v1152, 1.442695
    %v1176 = vpow.pop %v1175
    %v1177 = vmul.f32 %v1153, 1.442695
    %v1178 = vpow.pop %v1177
    %v1179 = vmul.f32 %v1154, 1.442695
    %v1180 = vpow.pop %v1179
    %v1181 = vmul.f32 %v1155, 1.442695
    %v1182 = vpow.pop %v1181
    %v1183 = vmul.f32 %v1156, 1.442695
    %v1184 = vpow.pop %v1183
    %v1185 = vmul.f32 %v1157, 1.442695
    %v1186 = vpow.pop %v1185
    %v1187 = vmul.f32 %v1158, 1.442695
    %v1188 = vpow.pop %v1187
    %v1189 = vmul.f32 %v1159, 1.442695
    %v1190 = vpow.pop %v1189
    %v1191 = vmul.f32 %v1160, 1.442695
    %v1192 = vpow.pop %v1191
    %v1193 = vsel %vm1096, %v1162, 0.0
    %v1194 = vsel %vm1096, %v1164, 0.0
    %v1195 = vsel %vm1096, %v1166, 0.0
    %v1196 = vsel %vm1096, %v1168, 0.0
    %v1197 = vsel %vm1096, %v1170, 0.0
    %v1198 = vsel %vm1096, %v1172, 0.0
    %v1199 = vsel %vm1096, %v1174, 0.0
    %v1200 = vsel %vm1096, %v1176, 0.0
    %v1201 = vsel %vm1096, %v1178, 0.0
    %v1202 = vsel %vm1096, %v1180, 0.0
    %v1203 = vsel %vm1096, %v1182, 0.0
    %v1204 = vsel %vm1096, %v1184, 0.0
    %v1205 = vsel %vm1096, %v1186, 0.0
    %v1206 = vsel %vm1096, %v1188, 0.0
    %v1207 = vsel %vm1096, %v1190, 0.0
    %v1208 = vsel %vm1096, %v1192, 0.0
    %1209 = vadd.xlane.f32.xlu0 %v1193
    %v1210 = vpop.xlane.xlu0 %1209
    %1211 = vadd.xlane.f32.xlu0 %v1194
    %v1212 = vpop.xlane.xlu0 %1211
    %1213 = vadd.xlane.f32.xlu0 %v1195
    %v1214 = vpop.xlane.xlu0 %1213
    %1215 = vadd.xlane.f32.xlu0 %v1196
    %v1216 = vpop.xlane.xlu0 %1215
    %1217 = vadd.xlane.f32.xlu0 %v1197
    %v1218 = vpop.xlane.xlu0 %1217
    %1219 = vadd.xlane.f32.xlu0 %v1198
    %v1220 = vpop.xlane.xlu0 %1219
    %1221 = vadd.xlane.f32.xlu0 %v1199
    %v1222 = vpop.xlane.xlu0 %1221
    %1223 = vadd.xlane.f32.xlu0 %v1200
    %v1224 = vpop.xlane.xlu0 %1223
    %1225 = vadd.xlane.f32.xlu0 %v1201
    %v1226 = vpop.xlane.xlu0 %1225
    %1227 = vadd.xlane.f32.xlu0 %v1202
    %v1228 = vpop.xlane.xlu0 %1227
    %1229 = vadd.xlane.f32.xlu0 %v1203
    %v1230 = vpop.xlane.xlu0 %1229
    %1231 = vadd.xlane.f32.xlu0 %v1204
    %v1232 = vpop.xlane.xlu0 %1231
    %1233 = vadd.xlane.f32.xlu0 %v1205
    %v1234 = vpop.xlane.xlu0 %1233
    %1235 = vadd.xlane.f32.xlu0 %v1206
    %v1236 = vpop.xlane.xlu0 %1235
    %1237 = vadd.xlane.f32.xlu0 %v1207
    %v1238 = vpop.xlane.xlu0 %1237
    %1239 = vadd.xlane.f32.xlu0 %v1208
    %v1240 = vpop.xlane.xlu0 %1239
    %v1241 = vrcp.pop %v1210
    %v1242 = vrcp.pop %v1212
    %v1243 = vrcp.pop %v1214
    %v1244 = vrcp.pop %v1216
    %v1245 = vrcp.pop %v1218
    %v1246 = vrcp.pop %v1220
    %v1247 = vrcp.pop %v1222
    %v1248 = vrcp.pop %v1224
    %v1249 = vrcp.pop %v1226
    %v1250 = vrcp.pop %v1228
    %v1251 = vrcp.pop %v1230
    %v1252 = vrcp.pop %v1232
    %v1253 = vrcp.pop %v1234
    %v1254 = vrcp.pop %v1236
    %v1255 = vrcp.pop %v1238
    %v1256 = vrcp.pop %v1240
    %v1257 = vmul.f32 %v1193, %v1241
    %v1258 = vmul.f32 %v1194, %v1242
    %v1259 = vmul.f32 %v1195, %v1243
    %v1260 = vmul.f32 %v1196, %v1244
    %v1261 = vmul.f32 %v1197, %v1245
    %v1262 = vmul.f32 %v1198, %v1246
    %v1263 = vmul.f32 %v1199, %v1247
    %v1264 = vmul.f32 %v1200, %v1248
    %v1265 = vmul.f32 %v1201, %v1249
    %v1266 = vmul.f32 %v1202, %v1250
    %v1267 = vmul.f32 %v1203, %v1251
    %v1268 = vmul.f32 %v1204, %v1252
    %v1269 = vmul.f32 %v1205, %v1253
    %v1270 = vmul.f32 %v1206, %v1254
    %v1271 = vmul.f32 %v1207, %v1255
    %v1272 = vmul.f32 %v1208, %v1256
    %1273 = vst [vmem:[#allocation11] sm:$0xff] %v1257
    %1274 = vst [vmem:[#allocation11 + $0x8] sm:$0xff] %v1258
    %1275 = vst [vmem:[#allocation11 + $0x10] sm:$0xff] %v1259
    %1276 = vst [vmem:[#allocation11 + $0x18] sm:$0xff] %v1260
    %1277 = vst [vmem:[#allocation11 + $0x20] sm:$0xff] %v1261
    %1278 = vst [vmem:[#allocation11 + $0x28] sm:$0xff] %v1262
    %1279 = vst [vmem:[#allocation11 + $0x30] sm:$0xff] %v1263
    %1280 = vst [vmem:[#allocation11 + $0x38] sm:$0xff] %v1264
    %1281 = vst [vmem:[#allocation11 + $0x40] sm:$0xff] %v1265
    %1282 = vst [vmem:[#allocation11 + $0x48] sm:$0xff] %v1266
    %1283 = vst [vmem:[#allocation11 + $0x50] sm:$0xff] %v1267
    %1284 = vst [vmem:[#allocation11 + $0x58] sm:$0xff] %v1268
    %1285 = vst [vmem:[#allocation11 + $0x60] sm:$0xff] %v1269
    %1286 = vst [vmem:[#allocation11 + $0x68] sm:$0xff] %v1270
    %1287 = vst [vmem:[#allocation11 + $0x70] sm:$0xff] %v1271
    %1288 = vst [vmem:[#allocation11 + $0x78] sm:$0xff] %v1272
    // Predicated region
    $region54: #{tpu_custom_call.1} parent=1 // pred_check
      _
    $region55: #{tpu_custom_call.1} parent=1 // pred_check_branch
      %1290 = sbr.rel (0) target = $region57
    $region56: #{tpu_custom_call.1} parent=1 // pred_region
      %s1292 = ssub.s32 2048, 2048
      %1293 = vsyncadd [#allocation4], %s1292
      %s1294 = sshll.u32 [#allocation11], 4
      %s1295 = int_to_ptr.vmem [resolvable:$true] %s1294
      %1300 = dma.vmem_to_hbm [thread:$0]  %s1295, 2048, %s8, [#allocation4], 128, 128, 8
    $region57: #{tpu_custom_call.1} parent=1 // pred_fallthru
      _
    // Predicated region
    $region58: #{tpu_custom_call.1} parent=1 // pred_check
      _
    $region59: #{tpu_custom_call.1} parent=1 // pred_check_branch
      %1302 = sbr.rel (0) target = $region61
    $region60: #{tpu_custom_call.1} parent=1 // pred_region
      %1303 = dma.done [#allocation4], 2048
    $region61: #{tpu_custom_call.1} parent=1 // pred_fallthru
      _
    %1304 = vsyncpa [#allocation3], 1
    %1305 = vsyncpa [#allocation6], 1
    %1306 = vsyncpa [#allocation9], 1
    %1307 = vsyncpa [#allocation4], 1

</llo_original>
